<compile_context>
chip_gen: v5e
topology: v5e:2x2
jax: 0.10.0
libtpu: 0.0.40
codegen_flags: <defaults>
</compile_context>

<pallas_src>
import functools

import jax
import jax.numpy as jnp
from jax.experimental import pallas as pl
from jax.experimental.pallas import tpu as pltpu


# -----------------------------------------------------------------------------
# Kernel
# -----------------------------------------------------------------------------
def coarse_encoder_kernel(x_ref, w1_ref, b1_ref, w2_ref, b2_ref, o_ref,
                          *, compute_dtype):
    # ---- Layer 1: Linear + ReLU (MXU matmul, f32 accumulate) ----------------
    x = x_ref[...].astype(compute_dtype)            # per-tile cast only
    h = jnp.dot(x, w1_ref[...], preferred_element_type=jnp.float32)
    h = jnp.maximum(h + b1_ref[...], 0.0)           # bias (1, D) broadcasts

    # ---- Layer 2: Linear + ReLU ----------------------------------------------
    h2 = jnp.dot(h.astype(compute_dtype), w2_ref[...],
                 preferred_element_type=jnp.float32)
    h2 = jnp.maximum(h2 + b2_ref[...], 0.0)

    # ---- F.normalize(dim=1): x / max(||x||_2, 1e-12) -------------------------
    # rsqrt(max(sq, eps^2)) == 1 / max(sqrt(sq), eps) (sqrt is monotone), so the
    # semantics match PyTorch while the divide becomes an EUP rsqrt + VPU vmul.
    sq = jnp.sum(h2 * h2, axis=-1, keepdims=True)   # (tile_b, 1)
    inv = jax.lax.rsqrt(jnp.maximum(sq, 1e-24))
    o_ref[...] = (h2 * inv).astype(o_ref.dtype)


# -----------------------------------------------------------------------------
# Sizing helpers
# -----------------------------------------------------------------------------
def _round_up(v, m):
    return ((v + m - 1) // m) * m


def _vmem_capacity_bytes():
    try:
        return int(pltpu.get_tpu_info().vmem_capacity_bytes)
    except Exception:            # conservative default: v7x has 64 MiB per TC
        return 64 << 20


def _pick_tile_b(B, max_tile):
    """Batch tile: full batch if small, otherwise >= 2 grid steps (v7x megacore)."""
    if B < 256:
        return B                                   # full block is always legal
    tile = _round_up(-(-B // 2), 128)              # ceil(B/2) rounded to 128
    if tile >= 512:
        tile = _round_up(tile, 256)                # keep the 256-wide MXU fed
    return max(128, min(tile, max_tile))


def _estimate_vmem(tile_b, F, D, x_item, w_item, out_item, weight_bufs):
    act = 2 * tile_b * F * x_item + 2 * tile_b * D * out_item          # x/out, 2-deep
    weights = weight_bufs * ((F * D + D * D) * w_item + 2 * D * 4)     # params + biases
    interm = tile_b * (F * 2 + D * (4 + 4 + 2) + 4)                    # casts, h, h2, sums
    return act + weights + interm


# -----------------------------------------------------------------------------
# Small-batch fallback (plain XLA — pallas_call overhead not worth it)
# -----------------------------------------------------------------------------
def _xla_forward(x, w1, b1, w2, b2, compute_dtype):
    h = jnp.dot(x.astype(compute_dtype), w1.astype(compute_dtype),
                preferred_element_type=jnp.float32)
    h = jnp.maximum(h + b1, 0.0)
    h2 = jnp.dot(h.astype(compute_dtype), w2.astype(compute_dtype),
                 preferred_element_type=jnp.float32)
    h2 = jnp.maximum(h2 + b2, 0.0)
    sq = jnp.sum(h2 * h2, axis=-1, keepdims=True)
    return (h2 * jax.lax.rsqrt(jnp.maximum(sq, 1e-24))).astype(x.dtype)


# -----------------------------------------------------------------------------
# Wrapper
# -----------------------------------------------------------------------------
def coarse_encoder(x, w1, b1, w2, b2, *, compute_dtype=jnp.bfloat16,
                   small_batch_threshold=128, force_pallas=False):
    """x: [B, F], w1: [F, D], b1: [1, D], w2: [D, D], b2: [1, D] -> [B, D]."""
    B, F = x.shape
    D = w1.shape[1]

    if not force_pallas and B < small_batch_threshold:
        return _xla_forward(x, w1, b1, w2, b2, compute_dtype)

    # Production path: weights travel (and stay VMEM-resident) in compute_dtype;
    # accumulation / bias / ReLU / normalization stay f32 inside the kernel.
    w1c = w1 if w1.dtype == compute_dtype else w1.astype(compute_dtype)
    w2c = w2 if w2.dtype == compute_dtype else w2.astype(compute_dtype)

    x_item = jnp.dtype(x.dtype).itemsize
    w_item = jnp.dtype(compute_dtype).itemsize
    out_item = x_item

    # Generation-aware tile / VMEM budget (v5e/v6e: 128 MiB, v7x: 64 MiB).
    cap = _vmem_capacity_bytes()
    max_tile = 2048 if cap >= (96 << 20) else 1024
    tile_b = _pick_tile_b(B, max_tile)
    est = _estimate_vmem(tile_b, F, D, x_item, w_item, out_item, weight_bufs=1)
    while est > int(0.8 * cap) and tile_b > 256 and tile_b < B:
        tile_b = max(256, tile_b // 2)
        est = _estimate_vmem(tile_b, F, D, x_item, w_item, out_item, weight_bufs=1)
    # TODO(synk): add a D-tiling path (N-tiling for layer 1, K-tiling with an f32
    # VMEM accumulator + pl.when init/finalize for layer 2) for hidden sizes whose
    # weights cannot stay fully VMEM-resident (e.g. D >= ~4K f32 on v7x).

    vmem_limit = int(min(max(2 * est, 16 << 20), int(0.9 * cap)))
    vmem_limit = max(vmem_limit, min(int(1.25 * est), cap))

    grid = (pl.cdiv(B, tile_b),)
    kernel = functools.partial(coarse_encoder_kernel, compute_dtype=compute_dtype)

    flops = 2 * B * (F * D + D * D) + 6 * B * D
    bytes_accessed = (B * F * x_item + (F * D + D * D) * w_item
                      + 2 * D * 4 + B * D * out_item)
    cost = pl.CostEstimate(flops=flops, transcendentals=B,
                           bytes_accessed=bytes_accessed)

    def _const_spec(shape, single_buffer):
        index_map = lambda i: (0,) * len(shape)
        if single_buffer:
            # Constant block index -> nothing to double-buffer; keep one copy.
            return pl.BlockSpec(shape, index_map, pipeline_mode=pl.Buffered(1))
        return pl.BlockSpec(shape, index_map)

    def _run(single_buffer_weights):
        return pl.pallas_call(
            kernel,
            out_shape=jax.ShapeDtypeStruct((B, D), x.dtype),
            grid=grid,
            in_specs=[
                pl.BlockSpec((tile_b, F), lambda i: (i, 0)),   # batch-tiled x
                _const_spec((F, D), single_buffer_weights),    # resident weights
                _const_spec((1, D), single_buffer_weights),
                _const_spec((D, D), single_buffer_weights),
                _const_spec((1, D), single_buffer_weights),
            ],
            out_specs=pl.BlockSpec((tile_b, D), lambda i: (i, 0)),
            compiler_params=pltpu.CompilerParams(
                dimension_semantics=("parallel",),   # v7x: shard batch on 2 TCs
                vmem_limit_bytes=vmem_limit,
            ),
            cost_estimate=cost,
        )(x, w1c, b1, w2c, b2)

    try:
        return _run(True)
    except Exception:
        # Fallback for jax builds without BlockSpec pipeline_mode / Buffered(1).
        return _run(False)


def _reference(x, w1, b1, w2, b2):
    h = jnp.maximum(x @ w1 + b1, 0.0)
    h2 = jnp.maximum(h @ w2 + b2, 0.0)
    norm = jnp.sqrt(jnp.sum(h2 * h2, axis=1, keepdims=True))
    return h2 / jnp.maximum(norm, 1e-12)


if __name__ == "__main__":
    F_IN, D = 32, 128    # in_dim (Fcnt) = 32, D = 128 (module default)

    key = jax.random.PRNGKey(0)
    kx, kw1, kb1, kw2, kb2 = jax.random.split(key, 5)

    # Deterministic synthetic parameters (nn.Linear(in_dim, D), nn.Linear(D, D)),
    # stored pre-transposed relative to PyTorch's [out, in] convention.
    w1 = jax.random.normal(kw1, (F_IN, D), dtype=jnp.float32) * 0.05
    b1 = jax.random.normal(kb1, (1, D), dtype=jnp.float32) * 0.01
    w2 = jax.random.normal(kw2, (D, D), dtype=jnp.float32) * 0.05
    b2 = jax.random.normal(kb2, (1, D), dtype=jnp.float32) * 0.01

    # ---- tiny batch: XLA fallback path ---------------------------------------
    x_small = jax.random.normal(kx, (8, F_IN), dtype=jnp.float32)
    ref_small = _reference(x_small, w1, b1, w2, b2)
    out_small = jax.block_until_ready(
        coarse_encoder(x_small, w1, b1, w2, b2, compute_dtype=jnp.float32))
    assert out_small.shape == (8, D)
    assert jnp.allclose(out_small, ref_small, atol=1e-4, rtol=1e-4)

    # ---- batched: Pallas kernel path (multi-step batch grid) -----------------
    x = jax.random.normal(kx, (512, F_IN), dtype=jnp.float32)
    ref = _reference(x, w1, b1, w2, b2)

    # Validation path (f32 matmuls) — matches PyTorch numerics tightly.
    out_f32 = jax.block_until_ready(
        coarse_encoder(x, w1, b1, w2, b2, compute_dtype=jnp.float32))
    assert out_f32.shape == (512, D)
    assert jnp.allclose(out_f32, ref, atol=1e-4, rtol=1e-4)

    # Production path (bf16 weights / matmul inputs, f32 accumulation + epilogue).
    out_bf16 = jax.block_until_ready(
        coarse_encoder(x, w1, b1, w2, b2, compute_dtype=jnp.bfloat16))
    assert out_bf16.shape == (512, D)
    assert jnp.allclose(out_bf16, ref, atol=3e-2, rtol=3e-2)

    print("KERNEL_OK")
</pallas_src>

<mosaic_0001>
module attributes {stable_mosaic.version = 11 : i64} {
  func.func @coarse_encoder_kernel(%arg0: i32, %arg1: memref<256x32xf32, #tpu.memory_space<vmem>>, %arg2: memref<32x128xf32, #tpu.memory_space<vmem>>, %arg3: memref<1x128xf32, #tpu.memory_space<vmem>>, %arg4: memref<128x128xf32, #tpu.memory_space<vmem>>, %arg5: memref<1x128xf32, #tpu.memory_space<vmem>>, %arg6: memref<256x128xf32, #tpu.memory_space<vmem>>) attributes {dimension_semantics = [#tpu.dimension_semantics<parallel>], iteration_bounds = array<i64: 2>, scalar_prefetch = 0 : i64, scratch_operands = 0 : i64, tpu.core_type = #tpu.core_type<tc>, window_params = [{transform_indices = @transform_0, window_bounds = array<i64: 256, 32>}, {pipeline_mode = #tpu.pipeline_mode<synchronous>, transform_indices = @transform_1, window_bounds = array<i64: 32, 128>}, {pipeline_mode = #tpu.pipeline_mode<synchronous>, transform_indices = @transform_2, window_bounds = array<i64: 1, 128>}, {pipeline_mode = #tpu.pipeline_mode<synchronous>, transform_indices = @transform_3, window_bounds = array<i64: 128, 128>}, {pipeline_mode = #tpu.pipeline_mode<synchronous>, transform_indices = @transform_4, window_bounds = array<i64: 1, 128>}, {transform_indices = @transform_5, window_bounds = array<i64: 256, 128>}]} {
    %c0 = arith.constant 0 : index
    %c0_0 = arith.constant 0 : index
    %0 = vector.load %arg1[%c0, %c0_0] : memref<256x32xf32, #tpu.memory_space<vmem>>, vector<256x32xf32>
    %c0_1 = arith.constant 0 : index
    %c0_2 = arith.constant 0 : index
    %1 = vector.load %arg2[%c0_1, %c0_2] : memref<32x128xf32, #tpu.memory_space<vmem>>, vector<32x128xf32>
    %cst = arith.constant dense<0.000000e+00> : vector<256x128xf32>
    %2 = tpu.matmul %0, %1, %cst {dimension_numbers = #tpu.dot_dimension_numbers<[1], [0], [0], [1], [0, 0, 1, 1], [], []>} : vector<256x32xf32>, vector<32x128xf32>, vector<256x128xf32> -> vector<256x128xf32>
    %c0_3 = arith.constant 0 : index
    %c0_4 = arith.constant 0 : index
    %3 = vector.load %arg3[%c0_3, %c0_4] : memref<1x128xf32, #tpu.memory_space<vmem>>, vector<1x128xf32>
    %4 = vector.broadcast %3 : vector<1x128xf32> to vector<256x128xf32>
    %5 = arith.addf %2, %4 : vector<256x128xf32>
    %cst_5 = arith.constant 0.000000e+00 : f32
    %6 = vector.broadcast %cst_5 : f32 to vector<256x128xf32>
    %7 = arith.maximumf %5, %6 : vector<256x128xf32>
    %c0_6 = arith.constant 0 : index
    %c0_7 = arith.constant 0 : index
    %8 = vector.load %arg4[%c0_6, %c0_7] : memref<128x128xf32, #tpu.memory_space<vmem>>, vector<128x128xf32>
    %cst_8 = arith.constant dense<0.000000e+00> : vector<256x128xf32>
    %9 = tpu.matmul %7, %8, %cst_8 {dimension_numbers = #tpu.dot_dimension_numbers<[1], [0], [0], [1], [0, 0, 1, 1], [], []>} : vector<256x128xf32>, vector<128x128xf32>, vector<256x128xf32> -> vector<256x128xf32>
    %c0_9 = arith.constant 0 : index
    %c0_10 = arith.constant 0 : index
    %10 = vector.load %arg5[%c0_9, %c0_10] : memref<1x128xf32, #tpu.memory_space<vmem>>, vector<1x128xf32>
    %11 = vector.broadcast %10 : vector<1x128xf32> to vector<256x128xf32>
    %12 = arith.addf %9, %11 : vector<256x128xf32>
    %cst_11 = arith.constant 0.000000e+00 : f32
    %13 = vector.broadcast %cst_11 : f32 to vector<256x128xf32>
    %14 = arith.maximumf %12, %13 : vector<256x128xf32>
    %15 = arith.mulf %14, %14 : vector<256x128xf32>
    %cst_12 = arith.constant dense<0.000000e+00> : vector<256xf32>
    %16 = vector.multi_reduction <add>, %15, %cst_12 [1] : vector<256x128xf32> to vector<256xf32>
    %17 = vector.shape_cast %16 : vector<256xf32> to vector<256x1xf32>
    %cst_13 = arith.constant 1.000000e-24 : f32
    %18 = vector.broadcast %cst_13 : f32 to vector<256x1xf32>
    %19 = arith.maximumf %17, %18 : vector<256x1xf32>
    %20 = math.rsqrt %19 : vector<256x1xf32>
    %21 = vector.broadcast %20 : vector<256x1xf32> to vector<256x128xf32>
    %22 = arith.mulf %14, %21 : vector<256x128xf32>
    %c0_14 = arith.constant 0 : index
    %c0_15 = arith.constant 0 : index
    %23 = vector.load %arg6[%c0_14, %c0_15] : memref<256x128xf32, #tpu.memory_space<vmem>>, vector<256x128xf32>
    tpu.vector_store %arg6[%c0_14, %c0_15], %22 {strides = array<i32>} : memref<256x128xf32, #tpu.memory_space<vmem>>, vector<256x128xf32>,
    return
  }
  func.func @transform_0(%arg0: i32) -> (i32, i32) {
    %c0_i32 = arith.constant 0 : i32
    %c0_i32_0 = arith.constant 0 : i32
    return %arg0, %c0_i32 : i32, i32
  }
  func.func @transform_1(%arg0: i32) -> (i32, i32) {
    %c0_i32 = arith.constant 0 : i32
    %c0_i32_0 = arith.constant 0 : i32
    %c0_i32_1 = arith.constant 0 : i32
    return %c0_i32, %c0_i32_0 : i32, i32
  }
  func.func @transform_2(%arg0: i32) -> (i32, i32) {
    %c0_i32 = arith.constant 0 : i32
    %c0_i32_0 = arith.constant 0 : i32
    %c0_i32_1 = arith.constant 0 : i32
    return %c0_i32, %c0_i32_0 : i32, i32
  }
  func.func @transform_3(%arg0: i32) -> (i32, i32) {
    %c0_i32 = arith.constant 0 : i32
    %c0_i32_0 = arith.constant 0 : i32
    %c0_i32_1 = arith.constant 0 : i32
    return %c0_i32, %c0_i32_0 : i32, i32
  }
  func.func @transform_4(%arg0: i32) -> (i32, i32) {
    %c0_i32 = arith.constant 0 : i32
    %c0_i32_0 = arith.constant 0 : i32
    %c0_i32_1 = arith.constant 0 : i32
    return %c0_i32, %c0_i32_0 : i32, i32
  }
  func.func @transform_5(%arg0: i32) -> (i32, i32) {
    %c0_i32 = arith.constant 0 : i32
    %c0_i32_0 = arith.constant 0 : i32
    return %arg0, %c0_i32 : i32, i32
  }
}

module attributes {stable_mosaic.version = 11 : i64} {
  func.func @coarse_encoder_kernel(%arg0: i32, %arg1: memref<256x32xf32, #tpu.memory_space<vmem>>, %arg2: memref<32x128xf32, #tpu.memory_space<vmem>>, %arg3: memref<1x128xf32, #tpu.memory_space<vmem>>, %arg4: memref<128x128xf32, #tpu.memory_space<vmem>>, %arg5: memref<1x128xf32, #tpu.memory_space<vmem>>, %arg6: memref<256x128xf32, #tpu.memory_space<vmem>>) attributes {dimension_semantics = [#tpu.dimension_semantics<parallel>], iteration_bounds = array<i64: 2>, scalar_prefetch = 0 : i64, scratch_operands = 0 : i64, tpu.core_type = #tpu.core_type<tc>, window_params = [{transform_indices = @transform_0, window_bounds = array<i64: 256, 32>}, {pipeline_mode = #tpu.pipeline_mode<synchronous>, transform_indices = @transform_1, window_bounds = array<i64: 32, 128>}, {pipeline_mode = #tpu.pipeline_mode<synchronous>, transform_indices = @transform_2, window_bounds = array<i64: 1, 128>}, {pipeline_mode = #tpu.pipeline_mode<synchronous>, transform_indices = @transform_3, window_bounds = array<i64: 128, 128>}, {pipeline_mode = #tpu.pipeline_mode<synchronous>, transform_indices = @transform_4, window_bounds = array<i64: 1, 128>}, {transform_indices = @transform_5, window_bounds = array<i64: 256, 128>}]} {
    %c0 = arith.constant 0 : index
    %c0_0 = arith.constant 0 : index
    %0 = vector.load %arg1[%c0, %c0_0] : memref<256x32xf32, #tpu.memory_space<vmem>>, vector<256x32xf32>
    %c0_1 = arith.constant 0 : index
    %c0_2 = arith.constant 0 : index
    %1 = vector.load %arg2[%c0_1, %c0_2] : memref<32x128xf32, #tpu.memory_space<vmem>>, vector<32x128xf32>
    %cst = arith.constant dense<0.000000e+00> : vector<256x128xf32>
    %2 = tpu.matmul %0, %1, %cst {dimension_numbers = #tpu.dot_dimension_numbers<[1], [0], [0], [1], [0, 0, 1, 1], [], []>} : vector<256x32xf32>, vector<32x128xf32>, vector<256x128xf32> -> vector<256x128xf32>
    %c0_3 = arith.constant 0 : index
    %c0_4 = arith.constant 0 : index
    %3 = vector.load %arg3[%c0_3, %c0_4] : memref<1x128xf32, #tpu.memory_space<vmem>>, vector<1x128xf32>
    %4 = vector.broadcast %3 : vector<1x128xf32> to vector<256x128xf32>
    %5 = arith.addf %2, %4 : vector<256x128xf32>
    %cst_5 = arith.constant 0.000000e+00 : f32
    %6 = vector.broadcast %cst_5 : f32 to vector<256x128xf32>
    %7 = arith.maximumf %5, %6 : vector<256x128xf32>
    %c0_6 = arith.constant 0 : index
    %c0_7 = arith.constant 0 : index
    %8 = vector.load %arg4[%c0_6, %c0_7] : memref<128x128xf32, #tpu.memory_space<vmem>>, vector<128x128xf32>
    %cst_8 = arith.constant dense<0.000000e+00> : vector<256x128xf32>
    %9 = tpu.matmul %7, %8, %cst_8 {dimension_numbers = #tpu.dot_dimension_numbers<[1], [0], [0], [1], [0, 0, 1, 1], [], []>} : vector<256x128xf32>, vector<128x128xf32>, vector<256x128xf32> -> vector<256x128xf32>
    %c0_9 = arith.constant 0 : index
    %c0_10 = arith.constant 0 : index
    %10 = vector.load %arg5[%c0_9, %c0_10] : memref<1x128xf32, #tpu.memory_space<vmem>>, vector<1x128xf32>
    %11 = vector.broadcast %10 : vector<1x128xf32> to vector<256x128xf32>
    %12 = arith.addf %9, %11 : vector<256x128xf32>
    %cst_11 = arith.constant 0.000000e+00 : f32
    %13 = vector.broadcast %cst_11 : f32 to vector<256x128xf32>
    %14 = arith.maximumf %12, %13 : vector<256x128xf32>
    %15 = arith.mulf %14, %14 : vector<256x128xf32>
    %cst_12 = arith.constant dense<0.000000e+00> : vector<256xf32>
    %16 = vector.multi_reduction <add>, %15, %cst_12 [1] : vector<256x128xf32> to vector<256xf32>
    %17 = vector.shape_cast %16 : vector<256xf32> to vector<256x1xf32>
    %cst_13 = arith.constant 1.000000e-24 : f32
    %18 = vector.broadcast %cst_13 : f32 to vector<256x1xf32>
    %19 = arith.maximumf %17, %18 : vector<256x1xf32>
    %20 = math.rsqrt %19 : vector<256x1xf32>
    %21 = vector.broadcast %20 : vector<256x1xf32> to vector<256x128xf32>
    %22 = arith.mulf %14, %21 : vector<256x128xf32>
    %c0_14 = arith.constant 0 : index
    %c0_15 = arith.constant 0 : index
    %23 = vector.load %arg6[%c0_14, %c0_15] : memref<256x128xf32, #tpu.memory_space<vmem>>, vector<256x128xf32>
    tpu.vector_store %arg6[%c0_14, %c0_15], %22 {strides = array<i32>} : memref<256x128xf32, #tpu.memory_space<vmem>>, vector<256x128xf32>,
    return
  }
  func.func @transform_0(%arg0: i32) -> (i32, i32) {
    %c0_i32 = arith.constant 0 : i32
    %c0_i32_0 = arith.constant 0 : i32
    return %arg0, %c0_i32 : i32, i32
  }
  func.func @transform_1(%arg0: i32) -> (i32, i32) {
    %c0_i32 = arith.constant 0 : i32
    %c0_i32_0 = arith.constant 0 : i32
    %c0_i32_1 = arith.constant 0 : i32
    return %c0_i32, %c0_i32_0 : i32, i32
  }
  func.func @transform_2(%arg0: i32) -> (i32, i32) {
    %c0_i32 = arith.constant 0 : i32
    %c0_i32_0 = arith.constant 0 : i32
    %c0_i32_1 = arith.constant 0 : i32
    return %c0_i32, %c0_i32_0 : i32, i32
  }
  func.func @transform_3(%arg0: i32) -> (i32, i32) {
    %c0_i32 = arith.constant 0 : i32
    %c0_i32_0 = arith.constant 0 : i32
    %c0_i32_1 = arith.constant 0 : i32
    return %c0_i32, %c0_i32_0 : i32, i32
  }
  func.func @transform_4(%arg0: i32) -> (i32, i32) {
    %c0_i32 = arith.constant 0 : i32
    %c0_i32_0 = arith.constant 0 : i32
    %c0_i32_1 = arith.constant 0 : i32
    return %c0_i32, %c0_i32_0 : i32, i32
  }
  func.func @transform_5(%arg0: i32) -> (i32, i32) {
    %c0_i32 = arith.constant 0 : i32
    %c0_i32_0 = arith.constant 0 : i32
    return %arg0, %c0_i32 : i32, i32
  }
}

</mosaic_0001>

<llo_original>
// kernel: tpu_custom_call.1
$region0: #{tpu_custom_call.1}
  #allocation0 [shape = 'u32[]', space=smem, size = 0x4, offset = 0x4, fixed_abs, tag = 'smem constant byte address 0x4 - core index']
  #allocation1 [shape = 'u32[72,128]{1,0:T(1,128)}', space=vmem, size = 0x9000, scoped, tag = 'internal scratch']
  %s0 = inlined_call_operand.vmem [shape: f32[512,32], index: 0, kind: input, shape index: {}]
  %s1 = inlined_call_operand.vmem [shape: f32[32,128], index: 1, kind: input, shape index: {}]
  %s2 = inlined_call_operand.vmem [shape: f32[1,128], index: 2, kind: input, shape index: {}]
  %s3 = inlined_call_operand.vmem [shape: f32[128,128], index: 3, kind: input, shape index: {}]
  %s4 = inlined_call_operand.vmem [shape: f32[1,128], index: 4, kind: input, shape index: {}]
  %s5 = inlined_call_operand.hbm [shape: f32[512,128], index: 5, kind: output, shape index: {}]
  %s6 = sld [smem:[#allocation0]]
  $region53: #{tpu_custom_call.1} parent=0
    _
  %s8 = ssub.s32 1, %s6
  %s9 = scalar_select 0, %s8, %s6
  $region1: #{tpu_custom_call.1} parent=0
    #allocation2 [shape = 'u8[262144]{0}', space=vmem, size = 0x40000, scoped, tag = 'output window, operand 0']
    #allocation3 [shape = 's32[2]{0}', space=sflag, size = 0x8, scoped, tag = 'scoped memory for tpu_custom_call.1']
    %10 = vsyncpa [#allocation3], 0
    %s11 = scalar_lea.sflag [#allocation3], 1
    %12 = vsyncpa %s11, 0
    loop: start=0, step=1, limit=4
    $region2: #{tpu_custom_call.1} parent=1 // loop_pre_header
      _
    $region3: #{tpu_custom_call.1} parent=1 // loop_header
      %s14 = sphi 0, %s18
      %p15 = scmp.ge.s32.totalorder %s14, 4
      %s24 = sphi 0, %s26
      %s27 = sphi 0, %s24
      %s28 = sphi 0, %s27
      %s44 = sphi 0, %s28
      %s48 = sphi 0, %s48
      %s50 = sphi 0, %s48
      %s51 = sphi 0, %s50
      %s65 = sphi 0, %s51
      %s69 = sphi 0, %s69
      %s71 = sphi 0, %s69
      %s72 = sphi 0, %s71
      %s86 = sphi 0, %s72
      %s90 = sphi 0, %s90
      %s92 = sphi 0, %s90
      %s93 = sphi 0, %s92
      %s107 = sphi 0, %s93
      %s111 = sphi 0, %s111
      %s113 = sphi 0, %s111
      %s114 = sphi 0, %s113
      %s128 = sphi 0, %s114
      %s134 = sphi 0, %s136
      %s137 = sphi 0, %s134
      %s138 = sphi 0, %s137
      %s154 = sphi 0, %s138
    $region4: #{tpu_custom_call.1} parent=1 // loop_header_branch
      %17 = sbr.rel (%p15) target = $region8
    $region5: #{tpu_custom_call.1} parent=1 // loop_body
      %s19 = ssub.s32 %s14, 1
      %s20 = ssub.s32 %s14, 2
      %s21 = sadd.s32 %s14, 1
      %s22 = ssub.s32 %s14, %s21
      %p23 = scmp.eq.s32.totalorder %s22, 0
      %s25 = sadd.s32 %s24, 1
      %s26 = scalar_select %p23, %s24, %s25
      %p29 = pneg %p23
      %p30 = scmp.eq.s32.totalorder %s14, 1
      %p31 = por %p29, %p30
      %p32 = scmp.ne.s32.totalorder %s24, %s27
      %p33 = scmp.eq.s32.totalorder %s14, 0
      %p34 = por %p32, %p33
      %p35 = scmp.ne.s32.totalorder %s24, %s27
      %p36 = scmp.eq.s32.totalorder %s19, 1
      %p37 = por %p35, %p36
      %p38 = scmp.ne.s32.totalorder %s27, %s28
      %p39 = scmp.eq.s32.totalorder %s19, 0
      %p40 = por %p38, %p39
      %p41 = scmp.ne.s32.totalorder %s27, %s28
      %p42 = scmp.eq.s32.totalorder %s20, 1
      %p43 = por %p41, %p42
      %p45 = scmp.ne.s32.totalorder %s28, %s44
      %p46 = scmp.eq.s32.totalorder %s20, 0
      %p47 = por %p45, %p46
      %s49 = sadd.s32 %s48, 1
      %p52 = scmp.eq.s32.totalorder %s14, 1
      %p53 = scmp.ne.s32.totalorder %s48, %s50
      %p54 = scmp.eq.s32.totalorder %s14, 0
      %p55 = por %p53, %p54
      %p56 = scmp.ne.s32.totalorder %s48, %s50
      %p57 = scmp.eq.s32.totalorder %s19, 1
      %p58 = por %p56, %p57
      %p59 = scmp.ne.s32.totalorder %s50, %s51
      %p60 = scmp.eq.s32.totalorder %s19, 0
      %p61 = por %p59, %p60
      %p62 = scmp.ne.s32.totalorder %s50, %s51
      %p63 = scmp.eq.s32.totalorder %s20, 1
      %p64 = por %p62, %p63
      %p66 = scmp.ne.s32.totalorder %s51, %s65
      %p67 = scmp.eq.s32.totalorder %s20, 0
      %p68 = por %p66, %p67
      %s70 = sadd.s32 %s69, 1
      %p73 = scmp.eq.s32.totalorder %s14, 1
      %p74 = scmp.ne.s32.totalorder %s69, %s71
      %p75 = scmp.eq.s32.totalorder %s14, 0
      %p76 = por %p74, %p75
      %p77 = scmp.ne.s32.totalorder %s69, %s71
      %p78 = scmp.eq.s32.totalorder %s19, 1
      %p79 = por %p77, %p78
      %p80 = scmp.ne.s32.totalorder %s71, %s72
      %p81 = scmp.eq.s32.totalorder %s19, 0
      %p82 = por %p80, %p81
      %p83 = scmp.ne.s32.totalorder %s71, %s72
      %p84 = scmp.eq.s32.totalorder %s20, 1
      %p85 = por %p83, %p84
      %p87 = scmp.ne.s32.totalorder %s72, %s86
      %p88 = scmp.eq.s32.totalorder %s20, 0
      %p89 = por %p87, %p88
      %s91 = sadd.s32 %s90, 1
      %p94 = scmp.eq.s32.totalorder %s14, 1
      %p95 = scmp.ne.s32.totalorder %s90, %s92
      %p96 = scmp.eq.s32.totalorder %s14, 0
      %p97 = por %p95, %p96
      %p98 = scmp.ne.s32.totalorder %s90, %s92
      %p99 = scmp.eq.s32.totalorder %s19, 1
      %p100 = por %p98, %p99
      %p101 = scmp.ne.s32.totalorder %s92, %s93
      %p102 = scmp.eq.s32.totalorder %s19, 0
      %p103 = por %p101, %p102
      %p104 = scmp.ne.s32.totalorder %s92, %s93
      %p105 = scmp.eq.s32.totalorder %s20, 1
      %p106 = por %p104, %p105
      %p108 = scmp.ne.s32.totalorder %s93, %s107
      %p109 = scmp.eq.s32.totalorder %s20, 0
      %p110 = por %p108, %p109
      %s112 = sadd.s32 %s111, 1
      %p115 = scmp.eq.s32.totalorder %s14, 1
      %p116 = scmp.ne.s32.totalorder %s111, %s113
      %p117 = scmp.eq.s32.totalorder %s14, 0
      %p118 = por %p116, %p117
      %p119 = scmp.ne.s32.totalorder %s111, %s113
      %p120 = scmp.eq.s32.totalorder %s19, 1
      %p121 = por %p119, %p120
      %p122 = scmp.ne.s32.totalorder %s113, %s114
      %p123 = scmp.eq.s32.totalorder %s19, 0
      %p124 = por %p122, %p123
      %p125 = scmp.ne.s32.totalorder %s113, %s114
      %p126 = scmp.eq.s32.totalorder %s20, 1
      %p127 = por %p125, %p126
      %p129 = scmp.ne.s32.totalorder %s114, %s128
      %p130 = scmp.eq.s32.totalorder %s20, 0
      %p131 = por %p129, %p130
      %s132 = ssub.s32 %s14, %s21
      %p133 = scmp.eq.s32.totalorder %s132, 0
      %s135 = sadd.s32 %s134, 1
      %s136 = scalar_select %p133, %s134, %s135
      %p139 = pneg %p133
      %p140 = scmp.eq.s32.totalorder %s14, 1
      %p141 = por %p139, %p140
      %p142 = scmp.ne.s32.totalorder %s134, %s137
      %p143 = scmp.eq.s32.totalorder %s14, 0
      %p144 = por %p142, %p143
      %p145 = scmp.ne.s32.totalorder %s134, %s137
      %p146 = scmp.eq.s32.totalorder %s19, 1
      %p147 = por %p145, %p146
      %p148 = scmp.ne.s32.totalorder %s137, %s138
      %p149 = scmp.eq.s32.totalorder %s19, 0
      %p150 = por %p148, %p149
      %p151 = scmp.ne.s32.totalorder %s137, %s138
      %p152 = scmp.eq.s32.totalorder %s20, 1
      %p153 = por %p151, %p152
      %p155 = scmp.ne.s32.totalorder %s138, %s154
      %p156 = scmp.eq.s32.totalorder %s20, 0
      %p157 = por %p155, %p156
      %p158 = scmp.le.s32.totalorder 1, %s14
      %p159 = scmp.lt.s32.totalorder %s14, 3
      %p160 = pnand %p158, %p159
      %p161 = pneg %p160
      // Predicated region
      $region9: #{tpu_custom_call.1} parent=5 // pred_check
        _
      $region10: #{tpu_custom_call.1} parent=5 // pred_check_branch
        %163 = sbr.rel (%p160) target = $region12
      $region11: #{tpu_custom_call.1} parent=5 // pred_region
        %s164 = ssub.s32 %s14, 1
        // Predicated region
        $region13: #{tpu_custom_call.1} parent=11 // pred_check
          %p165 = pneg %p61
        $region14: #{tpu_custom_call.1} parent=11 // pred_check_branch
          %167 = sbr.rel (%p165) target = $region16
        $region15: #{tpu_custom_call.1} parent=11 // pred_region
          _
        $region16: #{tpu_custom_call.1} parent=11 // pred_fallthru
          _
        // Predicated region
        $region17: #{tpu_custom_call.1} parent=11 // pred_check
          %p168 = pneg %p82
        $region18: #{tpu_custom_call.1} parent=11 // pred_check_branch
          %170 = sbr.rel (%p168) target = $region20
        $region19: #{tpu_custom_call.1} parent=11 // pred_region
          _
        $region20: #{tpu_custom_call.1} parent=11 // pred_fallthru
          _
        // Predicated region
        $region21: #{tpu_custom_call.1} parent=11 // pred_check
          %p171 = pneg %p103
        $region22: #{tpu_custom_call.1} parent=11 // pred_check_branch
          %173 = sbr.rel (%p171) target = $region24
        $region23: #{tpu_custom_call.1} parent=11 // pred_region
          _
        $region24: #{tpu_custom_call.1} parent=11 // pred_fallthru
          _
        // Predicated region
        $region25: #{tpu_custom_call.1} parent=11 // pred_check
          %p174 = pneg %p124
        $region26: #{tpu_custom_call.1} parent=11 // pred_check_branch
          %176 = sbr.rel (%p174) target = $region28
        $region27: #{tpu_custom_call.1} parent=11 // pred_region
          _
        $region28: #{tpu_custom_call.1} parent=11 // pred_fallthru
          _
      $region12: #{tpu_custom_call.1} parent=5 // pred_fallthru
        _
      %p177 = scmp.lt.s32.totalorder %s14, 2
      // Predicated region
      $region29: #{tpu_custom_call.1} parent=5 // pred_check
        %p178 = pneg %p177
      $region30: #{tpu_custom_call.1} parent=5 // pred_check_branch
        %180 = sbr.rel (%p178) target = $region32
      $region31: #{tpu_custom_call.1} parent=5 // pred_region
        // Predicated region
        $region33: #{tpu_custom_call.1} parent=31 // pred_check
          %p181 = pneg %p34
        $region34: #{tpu_custom_call.1} parent=31 // pred_check_branch
          %183 = sbr.rel (%p181) target = $region36
        $region35: #{tpu_custom_call.1} parent=31 // pred_region
          %s184 = smul.u32 32, %s14
          %p185 = scmp.lt.s32.totalorder %s184, 63
          %s186 = scalar_select %p185, %s184, 63
          %s187 = smul.addr %s186, 8
          %s188 = scalar_lea.vmem %s0, %s187
          %s189 = smul.u32 32, %s14
        $region36: #{tpu_custom_call.1} parent=31 // pred_fallthru
          _
      $region32: #{tpu_custom_call.1} parent=5 // pred_fallthru
        _
      %p190 = scmp.le.s32.totalorder 1, %s14
      %p191 = scmp.lt.s32.totalorder %s14, 3
      %p192 = pnand %p190, %p191
      %p193 = pneg %p192
      // Predicated region
      $region37: #{tpu_custom_call.1} parent=5 // pred_check
        _
      $region38: #{tpu_custom_call.1} parent=5 // pred_check_branch
        %195 = sbr.rel (%p192) target = $region40
      $region39: #{tpu_custom_call.1} parent=5 // pred_region
        %s196 = ssub.s32 %s14, 1
        %s197 = smul.u32 32, %s19
        %p198 = scmp.lt.s32.totalorder %s197, 63
        %s199 = scalar_select %p198, %s197, 63
        %s200 = smul.addr %s199, 8
        %s201 = scalar_lea.vmem %s0, %s200
        %p202 = pneg %p40
        %p203 = pneg %p37
        %p204 = pneg %p61
        %p205 = pneg %p58
        %p206 = pneg %p82
        %p207 = pneg %p79
        %p208 = pneg %p103
        %p209 = pneg %p100
        %p210 = pneg %p124
        %p211 = pneg %p121
        %p212 = pneg %p150
        %p213 = pneg %p147
        %s214 = sand.u32 %s137, 1
        %s215 = scalar_lea.sflag [#allocation3], %s214
        %s216 = sand.u32 %s137, 1
        %s217 = smul.addr %s216, 256
        %s218 = scalar_lea.vmem [#allocation2], %s217
        %s219 = smul.u32 32, %s19
        %p220 = scmp.lt.s32.totalorder %s219, 63
        %s221 = scalar_select %p220, %s219, 63
        %s222 = smul.addr %s221, 8
        %s223 = scalar_lea.vmem %s0, %s222
        %s224 = smul.u32 32, %s19
        %s225 = smul.u32 32, %s19
        %v226 = vld [vmem:[%s223] sm:$0xff]
        %v227 = vld [vmem:[%s223 + $0x8] sm:$0xff]
        %v228 = vld [vmem:[%s223 + $0x10] sm:$0xff]
        %v229 = vld [vmem:[%s223 + $0x18] sm:$0xff]
        %v230 = vld [vmem:[%s223 + $0x20] sm:$0xff]
        %v231 = vld [vmem:[%s223 + $0x28] sm:$0xff]
        %v232 = vld [vmem:[%s223 + $0x30] sm:$0xff]
        %v233 = vld [vmem:[%s223 + $0x38] sm:$0xff]
        %v234 = vld [vmem:[%s223 + $0x40] sm:$0xff]
        %v235 = vld [vmem:[%s223 + $0x48] sm:$0xff]
        %v236 = vld [vmem:[%s223 + $0x50] sm:$0xff]
        %v237 = vld [vmem:[%s223 + $0x58] sm:$0xff]
        %v238 = vld [vmem:[%s223 + $0x60] sm:$0xff]
        %v239 = vld [vmem:[%s223 + $0x68] sm:$0xff]
        %v240 = vld [vmem:[%s223 + $0x70] sm:$0xff]
        %v241 = vld [vmem:[%s223 + $0x78] sm:$0xff]
        %v242 = vld [vmem:[%s223 + $0x80] sm:$0xff]
        %v243 = vld [vmem:[%s223 + $0x88] sm:$0xff]
        %v244 = vld [vmem:[%s223 + $0x90] sm:$0xff]
        %v245 = vld [vmem:[%s223 + $0x98] sm:$0xff]
        %v246 = vld [vmem:[%s223 + $0xa0] sm:$0xff]
        %v247 = vld [vmem:[%s223 + $0xa8] sm:$0xff]
        %v248 = vld [vmem:[%s223 + $0xb0] sm:$0xff]
        %v249 = vld [vmem:[%s223 + $0xb8] sm:$0xff]
        %v250 = vld [vmem:[%s223 + $0xc0] sm:$0xff]
        %v251 = vld [vmem:[%s223 + $0xc8] sm:$0xff]
        %v252 = vld [vmem:[%s223 + $0xd0] sm:$0xff]
        %v253 = vld [vmem:[%s223 + $0xd8] sm:$0xff]
        %v254 = vld [vmem:[%s223 + $0xe0] sm:$0xff]
        %v255 = vld [vmem:[%s223 + $0xe8] sm:$0xff]
        %v256 = vld [vmem:[%s223 + $0xf0] sm:$0xff]
        %v257 = vld [vmem:[%s223 + $0xf8] sm:$0xff]
        %v258 = vld [vmem:[%s1] sm:$0xff]
        %v259 = vld [vmem:[%s1 + $0x8] sm:$0xff]
        %v260 = vld [vmem:[%s1 + $0x10] sm:$0xff]
        %v261 = vld [vmem:[%s1 + $0x18] sm:$0xff]
        %v262 = vld [vmem:[%s2] sm:$0x1]
        %v264 = vperm.slane %v262, 0
        %vm266 = vcmask 261120
        %v268 = vsel %vm266, %v226, 0
        %v271 = vsel %vm266, %v227, 0
        %v274 = vsel %vm266, %v228, 0
        %v277 = vsel %vm266, %v229, 0
        %v280 = vsel %vm266, %v230, 0
        %v283 = vsel %vm266, %v231, 0
        %v286 = vsel %vm266, %v232, 0
        %v289 = vsel %vm266, %v233, 0
        %v292 = vsel %vm266, %v234, 0
        %v295 = vsel %vm266, %v235, 0
        %v298 = vsel %vm266, %v236, 0
        %v301 = vsel %vm266, %v237, 0
        %v304 = vsel %vm266, %v238, 0
        %v307 = vsel %vm266, %v239, 0
        %v310 = vsel %vm266, %v240, 0
        %v313 = vsel %vm266, %v241, 0
        %v316 = vsel %vm266, %v242, 0
        %v319 = vsel %vm266, %v243, 0
        %v322 = vsel %vm266, %v244, 0
        %v325 = vsel %vm266, %v245, 0
        %v328 = vsel %vm266, %v246, 0
        %v331 = vsel %vm266, %v247, 0
        %v334 = vsel %vm266, %v248, 0
        %v337 = vsel %vm266, %v249, 0
        %v340 = vsel %vm266, %v250, 0
        %v343 = vsel %vm266, %v251, 0
        %v346 = vsel %vm266, %v252, 0
        %v349 = vsel %vm266, %v253, 0
        %v352 = vsel %vm266, %v254, 0
        %v355 = vsel %vm266, %v255, 0
        %v358 = vsel %vm266, %v256, 0
        %v361 = vsel %vm266, %v257, 0
        %363 = vmatpush.msra.mxu0 0.0
        %364 = vmatpush.msra.mxu0 0.0
        %365 = vmatpush.msra.mxu0 0.0
        %366 = vmatpush.msra.mxu0 0.0
        %367 = vmatpush.msra.mxu0 0.0
        %368 = vmatpush.msra.mxu0 0.0
        %369 = vmatpush.msra.mxu0 0.0
        %370 = vmatpush.msra.mxu0 0.0
        %371 = vmatpush.msra.mxu0 0.0
        %372 = vmatpush.msra.mxu0 0.0
        %373 = vmatpush.msra.mxu0 0.0
        %374 = vmatpush.msra.mxu0 0.0
        %375 = vmatpush.msra.mxu0 %v261
        %376 = vmatpush.msra.mxu0 %v260
        %377 = vmatpush.msra.mxu0 %v259
        %378 = vmatpush.msra.mxu0 %v258
        %379 = vmatmul.f32.gmra.mxu0 %v268
        %v380 = vpop.f32.mrf.mxu0
        %v381 = vadd.f32 %v264, %v380
        %382 = vmatmul.f32.gmra.mxu0 %v271
        %v383 = vpop.f32.mrf.mxu0
        %v384 = vadd.f32 %v264, %v383
        %385 = vmatmul.f32.gmra.mxu0 %v274
        %v386 = vpop.f32.mrf.mxu0
        %v387 = vadd.f32 %v264, %v386
        %388 = vmatmul.f32.gmra.mxu0 %v277
        %v389 = vpop.f32.mrf.mxu0
        %v390 = vadd.f32 %v264, %v389
        %391 = vmatmul.f32.gmra.mxu0 %v280
        %v392 = vpop.f32.mrf.mxu0
        %v393 = vadd.f32 %v264, %v392
        %394 = vmatmul.f32.gmra.mxu0 %v283
        %v395 = vpop.f32.mrf.mxu0
        %v396 = vadd.f32 %v264, %v395
        %397 = vmatmul.f32.gmra.mxu0 %v286
        %v398 = vpop.f32.mrf.mxu0
        %v399 = vadd.f32 %v264, %v398
        %400 = vmatmul.f32.gmra.mxu0 %v289
        %v401 = vpop.f32.mrf.mxu0
        %v402 = vadd.f32 %v264, %v401
        %403 = vmatmul.f32.gmra.mxu0 %v292
        %v404 = vpop.f32.mrf.mxu0
        %v405 = vadd.f32 %v264, %v404
        %406 = vmatmul.f32.gmra.mxu0 %v295
        %v407 = vpop.f32.mrf.mxu0
        %v408 = vadd.f32 %v264, %v407
        %409 = vmatmul.f32.gmra.mxu0 %v298
        %v410 = vpop.f32.mrf.mxu0
        %v411 = vadd.f32 %v264, %v410
        %412 = vmatmul.f32.gmra.mxu0 %v301
        %v413 = vpop.f32.mrf.mxu0
        %v414 = vadd.f32 %v264, %v413
        %415 = vmatmul.f32.gmra.mxu0 %v304
        %v416 = vpop.f32.mrf.mxu0
        %v417 = vadd.f32 %v264, %v416
        %418 = vmatmul.f32.gmra.mxu0 %v307
        %v419 = vpop.f32.mrf.mxu0
        %v420 = vadd.f32 %v264, %v419
        %421 = vmatmul.f32.gmra.mxu0 %v310
        %v422 = vpop.f32.mrf.mxu0
        %v423 = vadd.f32 %v264, %v422
        %424 = vmatmul.f32.gmra.mxu0 %v313
        %v425 = vpop.f32.mrf.mxu0
        %v426 = vadd.f32 %v264, %v425
        %427 = vmatmul.f32.gmra.mxu0 %v316
        %v428 = vpop.f32.mrf.mxu0
        %v429 = vadd.f32 %v264, %v428
        %430 = vmatmul.f32.gmra.mxu0 %v319
        %v431 = vpop.f32.mrf.mxu0
        %v432 = vadd.f32 %v264, %v431
        %433 = vmatmul.f32.gmra.mxu0 %v322
        %v434 = vpop.f32.mrf.mxu0
        %v435 = vadd.f32 %v264, %v434
        %436 = vmatmul.f32.gmra.mxu0 %v325
        %v437 = vpop.f32.mrf.mxu0
        %v438 = vadd.f32 %v264, %v437
        %439 = vmatmul.f32.gmra.mxu0 %v328
        %v440 = vpop.f32.mrf.mxu0
        %v441 = vadd.f32 %v264, %v440
        %442 = vmatmul.f32.gmra.mxu0 %v331
        %v443 = vpop.f32.mrf.mxu0
        %v444 = vadd.f32 %v264, %v443
        %445 = vmatmul.f32.gmra.mxu0 %v334
        %v446 = vpop.f32.mrf.mxu0
        %v447 = vadd.f32 %v264, %v446
        %448 = vmatmul.f32.gmra.mxu0 %v337
        %v449 = vpop.f32.mrf.mxu0
        %v450 = vadd.f32 %v264, %v449
        %451 = vmatmul.f32.gmra.mxu0 %v340
        %v452 = vpop.f32.mrf.mxu0
        %v453 = vadd.f32 %v264, %v452
        %454 = vmatmul.f32.gmra.mxu0 %v343
        %v455 = vpop.f32.mrf.mxu0
        %v456 = vadd.f32 %v264, %v455
        %457 = vmatmul.f32.gmra.mxu0 %v346
        %v458 = vpop.f32.mrf.mxu0
        %v459 = vadd.f32 %v264, %v458
        %460 = vmatmul.f32.gmra.mxu0 %v349
        %v461 = vpop.f32.mrf.mxu0
        %v462 = vadd.f32 %v264, %v461
        %463 = vmatmul.f32.gmra.mxu0 %v352
        %v464 = vpop.f32.mrf.mxu0
        %v465 = vadd.f32 %v264, %v464
        %466 = vmatmul.f32.gmra.mxu0 %v355
        %v467 = vpop.f32.mrf.mxu0
        %v468 = vadd.f32 %v264, %v467
        %469 = vmatmul.f32.gmra.mxu0 %v358
        %v470 = vpop.f32.mrf.mxu0
        %v471 = vadd.f32 %v264, %v470
        %472 = vmatmul.f32.gmra.mxu0 %v361
        %v473 = vpop.f32.mrf.mxu0
        %v474 = vadd.f32 %v264, %v473
        %475 = vdwg.mxu0
        %v476 = vmax.f32 %v381, 0.0
        %v477 = vmax.f32 %v384, 0.0
        %v478 = vmax.f32 %v387, 0.0
        %v479 = vmax.f32 %v390, 0.0
        %v480 = vmax.f32 %v393, 0.0
        %v481 = vmax.f32 %v396, 0.0
        %v482 = vmax.f32 %v399, 0.0
        %v483 = vmax.f32 %v402, 0.0
        %v484 = vmax.f32 %v405, 0.0
        %v485 = vmax.f32 %v408, 0.0
        %v486 = vmax.f32 %v411, 0.0
        %v487 = vmax.f32 %v414, 0.0
        %v488 = vmax.f32 %v417, 0.0
        %v489 = vmax.f32 %v420, 0.0
        %v490 = vmax.f32 %v423, 0.0
        %v491 = vmax.f32 %v426, 0.0
        %v492 = vmax.f32 %v429, 0.0
        %v493 = vmax.f32 %v432, 0.0
        %v494 = vmax.f32 %v435, 0.0
        %v495 = vmax.f32 %v438, 0.0
        %v496 = vmax.f32 %v441, 0.0
        %v497 = vmax.f32 %v444, 0.0
        %v498 = vmax.f32 %v447, 0.0
        %v499 = vmax.f32 %v450, 0.0
        %v500 = vmax.f32 %v453, 0.0
        %v501 = vmax.f32 %v456, 0.0
        %v502 = vmax.f32 %v459, 0.0
        %v503 = vmax.f32 %v462, 0.0
        %v504 = vmax.f32 %v465, 0.0
        %v505 = vmax.f32 %v468, 0.0
        %v506 = vmax.f32 %v471, 0.0
        %v507 = vmax.f32 %v474, 0.0
        %v508 = vld [vmem:[%s3] sm:$0xff]
        %v509 = vld [vmem:[%s3 + $0x8] sm:$0xff]
        %v510 = vld [vmem:[%s3 + $0x10] sm:$0xff]
        %v511 = vld [vmem:[%s3 + $0x18] sm:$0xff]
        %v512 = vld [vmem:[%s3 + $0x20] sm:$0xff]
        %v513 = vld [vmem:[%s3 + $0x28] sm:$0xff]
        %v514 = vld [vmem:[%s3 + $0x30] sm:$0xff]
        %v515 = vld [vmem:[%s3 + $0x38] sm:$0xff]
        %v516 = vld [vmem:[%s3 + $0x40] sm:$0xff]
        %v517 = vld [vmem:[%s3 + $0x48] sm:$0xff]
        %v518 = vld [vmem:[%s3 + $0x50] sm:$0xff]
        %v519 = vld [vmem:[%s3 + $0x58] sm:$0xff]
        %v520 = vld [vmem:[%s3 + $0x60] sm:$0xff]
        %v521 = vld [vmem:[%s3 + $0x68] sm:$0xff]
        %v522 = vld [vmem:[%s3 + $0x70] sm:$0xff]
        %v523 = vld [vmem:[%s3 + $0x78] sm:$0xff]
        %v524 = vld [vmem:[%s4] sm:$0x1]
        %v526 = vperm.slane %v524, 0
        %528 = vmatpush.msra.mxu0 %v523
        %529 = vmatpush.msra.mxu0 %v522
        %530 = vmatpush.msra.mxu0 %v521
        %531 = vmatpush.msra.mxu0 %v520
        %532 = vmatpush.msra.mxu0 %v519
        %533 = vmatpush.msra.mxu0 %v518
        %534 = vmatpush.msra.mxu0 %v517
        %535 = vmatpush.msra.mxu0 %v516
        %536 = vmatpush.msra.mxu0 %v515
        %537 = vmatpush.msra.mxu0 %v514
        %538 = vmatpush.msra.mxu0 %v513
        %539 = vmatpush.msra.mxu0 %v512
        %540 = vmatpush.msra.mxu0 %v511
        %541 = vmatpush.msra.mxu0 %v510
        %542 = vmatpush.msra.mxu0 %v509
        %543 = vmatpush.msra.mxu0 %v508
        %544 = vmatmul.f32.gmra.mxu0 %v476
        %v545 = vpop.f32.mrf.mxu0
        %v546 = vadd.f32 %v526, %v545
        %547 = vmatmul.f32.gmra.mxu0 %v477
        %v548 = vpop.f32.mrf.mxu0
        %v549 = vadd.f32 %v526, %v548
        %550 = vmatmul.f32.gmra.mxu0 %v478
        %v551 = vpop.f32.mrf.mxu0
        %v552 = vadd.f32 %v526, %v551
        %553 = vmatmul.f32.gmra.mxu0 %v479
        %v554 = vpop.f32.mrf.mxu0
        %v555 = vadd.f32 %v526, %v554
        %556 = vmatmul.f32.gmra.mxu0 %v480
        %v557 = vpop.f32.mrf.mxu0
        %v558 = vadd.f32 %v526, %v557
        %559 = vmatmul.f32.gmra.mxu0 %v481
        %v560 = vpop.f32.mrf.mxu0
        %v561 = vadd.f32 %v526, %v560
        %562 = vmatmul.f32.gmra.mxu0 %v482
        %v563 = vpop.f32.mrf.mxu0
        %v564 = vadd.f32 %v526, %v563
        %565 = vmatmul.f32.gmra.mxu0 %v483
        %v566 = vpop.f32.mrf.mxu0
        %v567 = vadd.f32 %v526, %v566
        %568 = vmatmul.f32.gmra.mxu0 %v484
        %v569 = vpop.f32.mrf.mxu0
        %v570 = vadd.f32 %v526, %v569
        %571 = vmatmul.f32.gmra.mxu0 %v485
        %v572 = vpop.f32.mrf.mxu0
        %v573 = vadd.f32 %v526, %v572
        %574 = vmatmul.f32.gmra.mxu0 %v486
        %v575 = vpop.f32.mrf.mxu0
        %v576 = vadd.f32 %v526, %v575
        %577 = vmatmul.f32.gmra.mxu0 %v487
        %v578 = vpop.f32.mrf.mxu0
        %v579 = vadd.f32 %v526, %v578
        %580 = vmatmul.f32.gmra.mxu0 %v488
        %v581 = vpop.f32.mrf.mxu0
        %v582 = vadd.f32 %v526, %v581
        %583 = vmatmul.f32.gmra.mxu0 %v489
        %v584 = vpop.f32.mrf.mxu0
        %v585 = vadd.f32 %v526, %v584
        %586 = vmatmul.f32.gmra.mxu0 %v490
        %v587 = vpop.f32.mrf.mxu0
        %v588 = vadd.f32 %v526, %v587
        %589 = vmatmul.f32.gmra.mxu0 %v491
        %v590 = vpop.f32.mrf.mxu0
        %v591 = vadd.f32 %v526, %v590
        %592 = vmatmul.f32.gmra.mxu0 %v492
        %v593 = vpop.f32.mrf.mxu0
        %v594 = vadd.f32 %v526, %v593
        %595 = vmatmul.f32.gmra.mxu0 %v493
        %v596 = vpop.f32.mrf.mxu0
        %v597 = vadd.f32 %v526, %v596
        %598 = vmatmul.f32.gmra.mxu0 %v494
        %v599 = vpop.f32.mrf.mxu0
        %v600 = vadd.f32 %v526, %v599
        %601 = vmatmul.f32.gmra.mxu0 %v495
        %v602 = vpop.f32.mrf.mxu0
        %v603 = vadd.f32 %v526, %v602
        %604 = vmatmul.f32.gmra.mxu0 %v496
        %v605 = vpop.f32.mrf.mxu0
        %v606 = vadd.f32 %v526, %v605
        %607 = vmatmul.f32.gmra.mxu0 %v497
        %v608 = vpop.f32.mrf.mxu0
        %v609 = vadd.f32 %v526, %v608
        %610 = vmatmul.f32.gmra.mxu0 %v498
        %v611 = vpop.f32.mrf.mxu0
        %v612 = vadd.f32 %v526, %v611
        %613 = vmatmul.f32.gmra.mxu0 %v499
        %v614 = vpop.f32.mrf.mxu0
        %v615 = vadd.f32 %v526, %v614
        %616 = vmatmul.f32.gmra.mxu0 %v500
        %v617 = vpop.f32.mrf.mxu0
        %v618 = vadd.f32 %v526, %v617
        %619 = vmatmul.f32.gmra.mxu0 %v501
        %v620 = vpop.f32.mrf.mxu0
        %v621 = vadd.f32 %v526, %v620
        %622 = vmatmul.f32.gmra.mxu0 %v502
        %v623 = vpop.f32.mrf.mxu0
        %v624 = vadd.f32 %v526, %v623
        %625 = vmatmul.f32.gmra.mxu0 %v503
        %v626 = vpop.f32.mrf.mxu0
        %v627 = vadd.f32 %v526, %v626
        %628 = vmatmul.f32.gmra.mxu0 %v504
        %v629 = vpop.f32.mrf.mxu0
        %v630 = vadd.f32 %v526, %v629
        %631 = vmatmul.f32.gmra.mxu0 %v505
        %v632 = vpop.f32.mrf.mxu0
        %v633 = vadd.f32 %v526, %v632
        %634 = vmatmul.f32.gmra.mxu0 %v506
        %v635 = vpop.f32.mrf.mxu0
        %v636 = vadd.f32 %v526, %v635
        %637 = vmatmul.f32.gmra.mxu0 %v507
        %v638 = vpop.f32.mrf.mxu0
        %v639 = vadd.f32 %v526, %v638
        %640 = vdwg.mxu0
        %v641 = vmax.f32 %v546, 0.0
        %v642 = vmax.f32 %v549, 0.0
        %v643 = vmax.f32 %v552, 0.0
        %v644 = vmax.f32 %v555, 0.0
        %v645 = vmax.f32 %v558, 0.0
        %v646 = vmax.f32 %v561, 0.0
        %v647 = vmax.f32 %v564, 0.0
        %v648 = vmax.f32 %v567, 0.0
        %v649 = vmax.f32 %v570, 0.0
        %v650 = vmax.f32 %v573, 0.0
        %v651 = vmax.f32 %v576, 0.0
        %v652 = vmax.f32 %v579, 0.0
        %v653 = vmax.f32 %v582, 0.0
        %v654 = vmax.f32 %v585, 0.0
        %v655 = vmax.f32 %v588, 0.0
        %v656 = vmax.f32 %v591, 0.0
        %v657 = vmax.f32 %v594, 0.0
        %v658 = vmax.f32 %v597, 0.0
        %v659 = vmax.f32 %v600, 0.0
        %v660 = vmax.f32 %v603, 0.0
        %v661 = vmax.f32 %v606, 0.0
        %v662 = vmax.f32 %v609, 0.0
        %v663 = vmax.f32 %v612, 0.0
        %v664 = vmax.f32 %v615, 0.0
        %v665 = vmax.f32 %v618, 0.0
        %v666 = vmax.f32 %v621, 0.0
        %v667 = vmax.f32 %v624, 0.0
        %v668 = vmax.f32 %v627, 0.0
        %v669 = vmax.f32 %v630, 0.0
        %v670 = vmax.f32 %v633, 0.0
        %v671 = vmax.f32 %v636, 0.0
        %v672 = vmax.f32 %v639, 0.0
        %v673 = vmul.f32 %v641, %v641
        %v674 = vmul.f32 %v642, %v642
        %v675 = vmul.f32 %v643, %v643
        %v676 = vmul.f32 %v644, %v644
        %v677 = vmul.f32 %v645, %v645
        %v678 = vmul.f32 %v646, %v646
        %v679 = vmul.f32 %v647, %v647
        %v680 = vmul.f32 %v648, %v648
        %v681 = vmul.f32 %v649, %v649
        %v682 = vmul.f32 %v650, %v650
        %v683 = vmul.f32 %v651, %v651
        %v684 = vmul.f32 %v652, %v652
        %v685 = vmul.f32 %v653, %v653
        %v686 = vmul.f32 %v654, %v654
        %v687 = vmul.f32 %v655, %v655
        %v688 = vmul.f32 %v656, %v656
        %v689 = vmul.f32 %v657, %v657
        %v690 = vmul.f32 %v658, %v658
        %v691 = vmul.f32 %v659, %v659
        %v692 = vmul.f32 %v660, %v660
        %v693 = vmul.f32 %v661, %v661
        %v694 = vmul.f32 %v662, %v662
        %v695 = vmul.f32 %v663, %v663
        %v696 = vmul.f32 %v664, %v664
        %v697 = vmul.f32 %v665, %v665
        %v698 = vmul.f32 %v666, %v666
        %v699 = vmul.f32 %v667, %v667
        %v700 = vmul.f32 %v668, %v668
        %v701 = vmul.f32 %v669, %v669
        %v702 = vmul.f32 %v670, %v670
        %v703 = vmul.f32 %v671, %v671
        %v704 = vmul.f32 %v672, %v672
        %705 = vadd.xlane.f32.xlu0 %v673
        %v706 = vpop.xlane.xlu0 %705
        %707 = vadd.xlane.f32.xlu0 %v674
        %v708 = vpop.xlane.xlu0 %707
        %709 = vadd.xlane.f32.xlu0 %v675
        %v710 = vpop.xlane.xlu0 %709
        %711 = vadd.xlane.f32.xlu0 %v676
        %v712 = vpop.xlane.xlu0 %711
        %713 = vadd.xlane.f32.xlu0 %v677
        %v714 = vpop.xlane.xlu0 %713
        %715 = vadd.xlane.f32.xlu0 %v678
        %v716 = vpop.xlane.xlu0 %715
        %717 = vadd.xlane.f32.xlu0 %v679
        %v718 = vpop.xlane.xlu0 %717
        %719 = vadd.xlane.f32.xlu0 %v680
        %v720 = vpop.xlane.xlu0 %719
        %721 = vadd.xlane.f32.xlu0 %v681
        %v722 = vpop.xlane.xlu0 %721
        %723 = vadd.xlane.f32.xlu0 %v682
        %v724 = vpop.xlane.xlu0 %723
        %725 = vadd.xlane.f32.xlu0 %v683
        %v726 = vpop.xlane.xlu0 %725
        %727 = vadd.xlane.f32.xlu0 %v684
        %v728 = vpop.xlane.xlu0 %727
        %729 = vadd.xlane.f32.xlu0 %v685
        %v730 = vpop.xlane.xlu0 %729
        %731 = vadd.xlane.f32.xlu0 %v686
        %v732 = vpop.xlane.xlu0 %731
        %733 = vadd.xlane.f32.xlu0 %v687
        %v734 = vpop.xlane.xlu0 %733
        %735 = vadd.xlane.f32.xlu0 %v688
        %v736 = vpop.xlane.xlu0 %735
        %737 = vadd.xlane.f32.xlu0 %v689
        %v738 = vpop.xlane.xlu0 %737
        %739 = vadd.xlane.f32.xlu0 %v690
        %v740 = vpop.xlane.xlu0 %739
        %741 = vadd.xlane.f32.xlu0 %v691
        %v742 = vpop.xlane.xlu0 %741
        %743 = vadd.xlane.f32.xlu0 %v692
        %v744 = vpop.xlane.xlu0 %743
        %745 = vadd.xlane.f32.xlu0 %v693
        %v746 = vpop.xlane.xlu0 %745
        %747 = vadd.xlane.f32.xlu0 %v694
        %v748 = vpop.xlane.xlu0 %747
        %749 = vadd.xlane.f32.xlu0 %v695
        %v750 = vpop.xlane.xlu0 %749
        %751 = vadd.xlane.f32.xlu0 %v696
        %v752 = vpop.xlane.xlu0 %751
        %753 = vadd.xlane.f32.xlu0 %v697
        %v754 = vpop.xlane.xlu0 %753
        %755 = vadd.xlane.f32.xlu0 %v698
        %v756 = vpop.xlane.xlu0 %755
        %757 = vadd.xlane.f32.xlu0 %v699
        %v758 = vpop.xlane.xlu0 %757
        %759 = vadd.xlane.f32.xlu0 %v700
        %v760 = vpop.xlane.xlu0 %759
        %761 = vadd.xlane.f32.xlu0 %v701
        %v762 = vpop.xlane.xlu0 %761
        %763 = vadd.xlane.f32.xlu0 %v702
        %v764 = vpop.xlane.xlu0 %763
        %765 = vadd.xlane.f32.xlu0 %v703
        %v766 = vpop.xlane.xlu0 %765
        %767 = vadd.xlane.f32.xlu0 %v704
        %v768 = vpop.xlane.xlu0 %767
        %v769 = vmax.f32 %v706, 1e-24
        %v770 = vmax.f32 %v708, 1e-24
        %v771 = vmax.f32 %v710, 1e-24
        %v772 = vmax.f32 %v712, 1e-24
        %v773 = vmax.f32 %v714, 1e-24
        %v774 = vmax.f32 %v716, 1e-24
        %v775 = vmax.f32 %v718, 1e-24
        %v776 = vmax.f32 %v720, 1e-24
        %v777 = vmax.f32 %v722, 1e-24
        %v778 = vmax.f32 %v724, 1e-24
        %v779 = vmax.f32 %v726, 1e-24
        %v780 = vmax.f32 %v728, 1e-24
        %v781 = vmax.f32 %v730, 1e-24
        %v782 = vmax.f32 %v732, 1e-24
        %v783 = vmax.f32 %v734, 1e-24
        %v784 = vmax.f32 %v736, 1e-24
        %v785 = vmax.f32 %v738, 1e-24
        %v786 = vmax.f32 %v740, 1e-24
        %v787 = vmax.f32 %v742, 1e-24
        %v788 = vmax.f32 %v744, 1e-24
        %v789 = vmax.f32 %v746, 1e-24
        %v790 = vmax.f32 %v748, 1e-24
        %v791 = vmax.f32 %v750, 1e-24
        %v792 = vmax.f32 %v752, 1e-24
        %v793 = vmax.f32 %v754, 1e-24
        %v794 = vmax.f32 %v756, 1e-24
        %v795 = vmax.f32 %v758, 1e-24
        %v796 = vmax.f32 %v760, 1e-24
        %v797 = vmax.f32 %v762, 1e-24
        %v798 = vmax.f32 %v764, 1e-24
        %v799 = vmax.f32 %v766, 1e-24
        %v800 = vmax.f32 %v768, 1e-24
        %v801 = vrsqrt.pop %v769
        %v802 = vmul.f32 %v801, %v769
        %v803 = vmul.f32 %v802, %v801
        %v804 = vmul.f32 0.5, %v803
        %v805 = vsub.f32 1.5, %v804
        %v806 = vmul.f32 %v801, %v805
        %vm807 = vweird.f32 %v769
        %vm808 = vweird.f32 %v801
        %vm809 = vmor %vm807, %vm808
        %v810 = vsel %vm809, %v801, %v806
        %v811 = vrsqrt.pop %v770
        %v812 = vmul.f32 %v811, %v770
        %v813 = vmul.f32 %v812, %v811
        %v814 = vmul.f32 0.5, %v813
        %v815 = vsub.f32 1.5, %v814
        %v816 = vmul.f32 %v811, %v815
        %vm817 = vweird.f32 %v770
        %vm818 = vweird.f32 %v811
        %vm819 = vmor %vm817, %vm818
        %v820 = vsel %vm819, %v811, %v816
        %v821 = vrsqrt.pop %v771
        %v822 = vmul.f32 %v821, %v771
        %v823 = vmul.f32 %v822, %v821
        %v824 = vmul.f32 0.5, %v823
        %v825 = vsub.f32 1.5, %v824
        %v826 = vmul.f32 %v821, %v825
        %vm827 = vweird.f32 %v771
        %vm828 = vweird.f32 %v821
        %vm829 = vmor %vm827, %vm828
        %v830 = vsel %vm829, %v821, %v826
        %v831 = vrsqrt.pop %v772
        %v832 = vmul.f32 %v831, %v772
        %v833 = vmul.f32 %v832, %v831
        %v834 = vmul.f32 0.5, %v833
        %v835 = vsub.f32 1.5, %v834
        %v836 = vmul.f32 %v831, %v835
        %vm837 = vweird.f32 %v772
        %vm838 = vweird.f32 %v831
        %vm839 = vmor %vm837, %vm838
        %v840 = vsel %vm839, %v831, %v836
        %v841 = vrsqrt.pop %v773
        %v842 = vmul.f32 %v841, %v773
        %v843 = vmul.f32 %v842, %v841
        %v844 = vmul.f32 0.5, %v843
        %v845 = vsub.f32 1.5, %v844
        %v846 = vmul.f32 %v841, %v845
        %vm847 = vweird.f32 %v773
        %vm848 = vweird.f32 %v841
        %vm849 = vmor %vm847, %vm848
        %v850 = vsel %vm849, %v841, %v846
        %v851 = vrsqrt.pop %v774
        %v852 = vmul.f32 %v851, %v774
        %v853 = vmul.f32 %v852, %v851
        %v854 = vmul.f32 0.5, %v853
        %v855 = vsub.f32 1.5, %v854
        %v856 = vmul.f32 %v851, %v855
        %vm857 = vweird.f32 %v774
        %vm858 = vweird.f32 %v851
        %vm859 = vmor %vm857, %vm858
        %v860 = vsel %vm859, %v851, %v856
        %v861 = vrsqrt.pop %v775
        %v862 = vmul.f32 %v861, %v775
        %v863 = vmul.f32 %v862, %v861
        %v864 = vmul.f32 0.5, %v863
        %v865 = vsub.f32 1.5, %v864
        %v866 = vmul.f32 %v861, %v865
        %vm867 = vweird.f32 %v775
        %vm868 = vweird.f32 %v861
        %vm869 = vmor %vm867, %vm868
        %v870 = vsel %vm869, %v861, %v866
        %v871 = vrsqrt.pop %v776
        %v872 = vmul.f32 %v871, %v776
        %v873 = vmul.f32 %v872, %v871
        %v874 = vmul.f32 0.5, %v873
        %v875 = vsub.f32 1.5, %v874
        %v876 = vmul.f32 %v871, %v875
        %vm877 = vweird.f32 %v776
        %vm878 = vweird.f32 %v871
        %vm879 = vmor %vm877, %vm878
        %v880 = vsel %vm879, %v871, %v876
        %v881 = vrsqrt.pop %v777
        %v882 = vmul.f32 %v881, %v777
        %v883 = vmul.f32 %v882, %v881
        %v884 = vmul.f32 0.5, %v883
        %v885 = vsub.f32 1.5, %v884
        %v886 = vmul.f32 %v881, %v885
        %vm887 = vweird.f32 %v777
        %vm888 = vweird.f32 %v881
        %vm889 = vmor %vm887, %vm888
        %v890 = vsel %vm889, %v881, %v886
        %v891 = vrsqrt.pop %v778
        %v892 = vmul.f32 %v891, %v778
        %v893 = vmul.f32 %v892, %v891
        %v894 = vmul.f32 0.5, %v893
        %v895 = vsub.f32 1.5, %v894
        %v896 = vmul.f32 %v891, %v895
        %vm897 = vweird.f32 %v778
        %vm898 = vweird.f32 %v891
        %vm899 = vmor %vm897, %vm898
        %v900 = vsel %vm899, %v891, %v896
        %v901 = vrsqrt.pop %v779
        %v902 = vmul.f32 %v901, %v779
        %v903 = vmul.f32 %v902, %v901
        %v904 = vmul.f32 0.5, %v903
        %v905 = vsub.f32 1.5, %v904
        %v906 = vmul.f32 %v901, %v905
        %vm907 = vweird.f32 %v779
        %vm908 = vweird.f32 %v901
        %vm909 = vmor %vm907, %vm908
        %v910 = vsel %vm909, %v901, %v906
        %v911 = vrsqrt.pop %v780
        %v912 = vmul.f32 %v911, %v780
        %v913 = vmul.f32 %v912, %v911
        %v914 = vmul.f32 0.5, %v913
        %v915 = vsub.f32 1.5, %v914
        %v916 = vmul.f32 %v911, %v915
        %vm917 = vweird.f32 %v780
        %vm918 = vweird.f32 %v911
        %vm919 = vmor %vm917, %vm918
        %v920 = vsel %vm919, %v911, %v916
        %v921 = vrsqrt.pop %v781
        %v922 = vmul.f32 %v921, %v781
        %v923 = vmul.f32 %v922, %v921
        %v924 = vmul.f32 0.5, %v923
        %v925 = vsub.f32 1.5, %v924
        %v926 = vmul.f32 %v921, %v925
        %vm927 = vweird.f32 %v781
        %vm928 = vweird.f32 %v921
        %vm929 = vmor %vm927, %vm928
        %v930 = vsel %vm929, %v921, %v926
        %v931 = vrsqrt.pop %v782
        %v932 = vmul.f32 %v931, %v782
        %v933 = vmul.f32 %v932, %v931
        %v934 = vmul.f32 0.5, %v933
        %v935 = vsub.f32 1.5, %v934
        %v936 = vmul.f32 %v931, %v935
        %vm937 = vweird.f32 %v782
        %vm938 = vweird.f32 %v931
        %vm939 = vmor %vm937, %vm938
        %v940 = vsel %vm939, %v931, %v936
        %v941 = vrsqrt.pop %v783
        %v942 = vmul.f32 %v941, %v783
        %v943 = vmul.f32 %v942, %v941
        %v944 = vmul.f32 0.5, %v943
        %v945 = vsub.f32 1.5, %v944
        %v946 = vmul.f32 %v941, %v945
        %vm947 = vweird.f32 %v783
        %vm948 = vweird.f32 %v941
        %vm949 = vmor %vm947, %vm948
        %v950 = vsel %vm949, %v941, %v946
        %v951 = vrsqrt.pop %v784
        %v952 = vmul.f32 %v951, %v784
        %v953 = vmul.f32 %v952, %v951
        %v954 = vmul.f32 0.5, %v953
        %v955 = vsub.f32 1.5, %v954
        %v956 = vmul.f32 %v951, %v955
        %vm957 = vweird.f32 %v784
        %vm958 = vweird.f32 %v951
        %vm959 = vmor %vm957, %vm958
        %v960 = vsel %vm959, %v951, %v956
        %v961 = vrsqrt.pop %v785
        %v962 = vmul.f32 %v961, %v785
        %v963 = vmul.f32 %v962, %v961
        %v964 = vmul.f32 0.5, %v963
        %v965 = vsub.f32 1.5, %v964
        %v966 = vmul.f32 %v961, %v965
        %vm967 = vweird.f32 %v785
        %vm968 = vweird.f32 %v961
        %vm969 = vmor %vm967, %vm968
        %v970 = vsel %vm969, %v961, %v966
        %v971 = vrsqrt.pop %v786
        %v972 = vmul.f32 %v971, %v786
        %v973 = vmul.f32 %v972, %v971
        %v974 = vmul.f32 0.5, %v973
        %v975 = vsub.f32 1.5, %v974
        %v976 = vmul.f32 %v971, %v975
        %vm977 = vweird.f32 %v786
        %vm978 = vweird.f32 %v971
        %vm979 = vmor %vm977, %vm978
        %v980 = vsel %vm979, %v971, %v976
        %v981 = vrsqrt.pop %v787
        %v982 = vmul.f32 %v981, %v787
        %v983 = vmul.f32 %v982, %v981
        %v984 = vmul.f32 0.5, %v983
        %v985 = vsub.f32 1.5, %v984
        %v986 = vmul.f32 %v981, %v985
        %vm987 = vweird.f32 %v787
        %vm988 = vweird.f32 %v981
        %vm989 = vmor %vm987, %vm988
        %v990 = vsel %vm989, %v981, %v986
        %v991 = vrsqrt.pop %v788
        %v992 = vmul.f32 %v991, %v788
        %v993 = vmul.f32 %v992, %v991
        %v994 = vmul.f32 0.5, %v993
        %v995 = vsub.f32 1.5, %v994
        %v996 = vmul.f32 %v991, %v995
        %vm997 = vweird.f32 %v788
        %vm998 = vweird.f32 %v991
        %vm999 = vmor %vm997, %vm998
        %v1000 = vsel %vm999, %v991, %v996
        %v1001 = vrsqrt.pop %v789
        %v1002 = vmul.f32 %v1001, %v789
        %v1003 = vmul.f32 %v1002, %v1001
        %v1004 = vmul.f32 0.5, %v1003
        %v1005 = vsub.f32 1.5, %v1004
        %v1006 = vmul.f32 %v1001, %v1005
        %vm1007 = vweird.f32 %v789
        %vm1008 = vweird.f32 %v1001
        %vm1009 = vmor %vm1007, %vm1008
        %v1010 = vsel %vm1009, %v1001, %v1006
        %v1011 = vrsqrt.pop %v790
        %v1012 = vmul.f32 %v1011, %v790
        %v1013 = vmul.f32 %v1012, %v1011
        %v1014 = vmul.f32 0.5, %v1013
        %v1015 = vsub.f32 1.5, %v1014
        %v1016 = vmul.f32 %v1011, %v1015
        %vm1017 = vweird.f32 %v790
        %vm1018 = vweird.f32 %v1011
        %vm1019 = vmor %vm1017, %vm1018
        %v1020 = vsel %vm1019, %v1011, %v1016
        %v1021 = vrsqrt.pop %v791
        %v1022 = vmul.f32 %v1021, %v791
        %v1023 = vmul.f32 %v1022, %v1021
        %v1024 = vmul.f32 0.5, %v1023
        %v1025 = vsub.f32 1.5, %v1024
        %v1026 = vmul.f32 %v1021, %v1025
        %vm1027 = vweird.f32 %v791
        %vm1028 = vweird.f32 %v1021
        %vm1029 = vmor %vm1027, %vm1028
        %v1030 = vsel %vm1029, %v1021, %v1026
        %v1031 = vrsqrt.pop %v792
        %v1032 = vmul.f32 %v1031, %v792
        %v1033 = vmul.f32 %v1032, %v1031
        %v1034 = vmul.f32 0.5, %v1033
        %v1035 = vsub.f32 1.5, %v1034
        %v1036 = vmul.f32 %v1031, %v1035
        %vm1037 = vweird.f32 %v792
        %vm1038 = vweird.f32 %v1031
        %vm1039 = vmor %vm1037, %vm1038
        %v1040 = vsel %vm1039, %v1031, %v1036
        %v1041 = vrsqrt.pop %v793
        %v1042 = vmul.f32 %v1041, %v793
        %v1043 = vmul.f32 %v1042, %v1041
        %v1044 = vmul.f32 0.5, %v1043
        %v1045 = vsub.f32 1.5, %v1044
        %v1046 = vmul.f32 %v1041, %v1045
        %vm1047 = vweird.f32 %v793
        %vm1048 = vweird.f32 %v1041
        %vm1049 = vmor %vm1047, %vm1048
        %v1050 = vsel %vm1049, %v1041, %v1046
        %v1051 = vrsqrt.pop %v794
        %v1052 = vmul.f32 %v1051, %v794
        %v1053 = vmul.f32 %v1052, %v1051
        %v1054 = vmul.f32 0.5, %v1053
        %v1055 = vsub.f32 1.5, %v1054
        %v1056 = vmul.f32 %v1051, %v1055
        %vm1057 = vweird.f32 %v794
        %vm1058 = vweird.f32 %v1051
        %vm1059 = vmor %vm1057, %vm1058
        %v1060 = vsel %vm1059, %v1051, %v1056
        %v1061 = vrsqrt.pop %v795
        %v1062 = vmul.f32 %v1061, %v795
        %v1063 = vmul.f32 %v1062, %v1061
        %v1064 = vmul.f32 0.5, %v1063
        %v1065 = vsub.f32 1.5, %v1064
        %v1066 = vmul.f32 %v1061, %v1065
        %vm1067 = vweird.f32 %v795
        %vm1068 = vweird.f32 %v1061
        %vm1069 = vmor %vm1067, %vm1068
        %v1070 = vsel %vm1069, %v1061, %v1066
        %v1071 = vrsqrt.pop %v796
        %v1072 = vmul.f32 %v1071, %v796
        %v1073 = vmul.f32 %v1072, %v1071
        %v1074 = vmul.f32 0.5, %v1073
        %v1075 = vsub.f32 1.5, %v1074
        %v1076 = vmul.f32 %v1071, %v1075
        %vm1077 = vweird.f32 %v796
        %vm1078 = vweird.f32 %v1071
        %vm1079 = vmor %vm1077, %vm1078
        %v1080 = vsel %vm1079, %v1071, %v1076
        %v1081 = vrsqrt.pop %v797
        %v1082 = vmul.f32 %v1081, %v797
        %v1083 = vmul.f32 %v1082, %v1081
        %v1084 = vmul.f32 0.5, %v1083
        %v1085 = vsub.f32 1.5, %v1084
        %v1086 = vmul.f32 %v1081, %v1085
        %vm1087 = vweird.f32 %v797
        %vm1088 = vweird.f32 %v1081
        %vm1089 = vmor %vm1087, %vm1088
        %v1090 = vsel %vm1089, %v1081, %v1086
        %v1091 = vrsqrt.pop %v798
        %v1092 = vmul.f32 %v1091, %v798
        %v1093 = vmul.f32 %v1092, %v1091
        %v1094 = vmul.f32 0.5, %v1093
        %v1095 = vsub.f32 1.5, %v1094
        %v1096 = vmul.f32 %v1091, %v1095
        %vm1097 = vweird.f32 %v798
        %vm1098 = vweird.f32 %v1091
        %vm1099 = vmor %vm1097, %vm1098
        %v1100 = vsel %vm1099, %v1091, %v1096
        %v1101 = vrsqrt.pop %v799
        %v1102 = vmul.f32 %v1101, %v799
        %v1103 = vmul.f32 %v1102, %v1101
        %v1104 = vmul.f32 0.5, %v1103
        %v1105 = vsub.f32 1.5, %v1104
        %v1106 = vmul.f32 %v1101, %v1105
        %vm1107 = vweird.f32 %v799
        %vm1108 = vweird.f32 %v1101
        %vm1109 = vmor %vm1107, %vm1108
        %v1110 = vsel %vm1109, %v1101, %v1106
        %v1111 = vrsqrt.pop %v800
        %v1112 = vmul.f32 %v1111, %v800
        %v1113 = vmul.f32 %v1112, %v1111
        %v1114 = vmul.f32 0.5, %v1113
        %v1115 = vsub.f32 1.5, %v1114
        %v1116 = vmul.f32 %v1111, %v1115
        %vm1117 = vweird.f32 %v800
        %vm1118 = vweird.f32 %v1111
        %vm1119 = vmor %vm1117, %vm1118
        %v1120 = vsel %vm1119, %v1111, %v1116
        %v1121 = vmul.f32 %v641, %v810
        %v1122 = vmul.f32 %v642, %v820
        %v1123 = vmul.f32 %v643, %v830
        %v1124 = vmul.f32 %v644, %v840
        %v1125 = vmul.f32 %v645, %v850
        %v1126 = vmul.f32 %v646, %v860
        %v1127 = vmul.f32 %v647, %v870
        %v1128 = vmul.f32 %v648, %v880
        %v1129 = vmul.f32 %v649, %v890
        %v1130 = vmul.f32 %v650, %v900
        %v1131 = vmul.f32 %v651, %v910
        %v1132 = vmul.f32 %v652, %v920
        %v1133 = vmul.f32 %v653, %v930
        %v1134 = vmul.f32 %v654, %v940
        %v1135 = vmul.f32 %v655, %v950
        %v1136 = vmul.f32 %v656, %v960
        %v1137 = vmul.f32 %v657, %v970
        %v1138 = vmul.f32 %v658, %v980
        %v1139 = vmul.f32 %v659, %v990
        %v1140 = vmul.f32 %v660, %v1000
        %v1141 = vmul.f32 %v661, %v1010
        %v1142 = vmul.f32 %v662, %v1020
        %v1143 = vmul.f32 %v663, %v1030
        %v1144 = vmul.f32 %v664, %v1040
        %v1145 = vmul.f32 %v665, %v1050
        %v1146 = vmul.f32 %v666, %v1060
        %v1147 = vmul.f32 %v667, %v1070
        %v1148 = vmul.f32 %v668, %v1080
        %v1149 = vmul.f32 %v669, %v1090
        %v1150 = vmul.f32 %v670, %v1100
        %v1151 = vmul.f32 %v671, %v1110
        %v1152 = vmul.f32 %v672, %v1120
        %1153 = vst [vmem:[%s218] sm:$0xff] %v1121
        %1154 = vst [vmem:[%s218 + $0x8] sm:$0xff] %v1122
        %1155 = vst [vmem:[%s218 + $0x10] sm:$0xff] %v1123
        %1156 = vst [vmem:[%s218 + $0x18] sm:$0xff] %v1124
        %1157 = vst [vmem:[%s218 + $0x20] sm:$0xff] %v1125
        %1158 = vst [vmem:[%s218 + $0x28] sm:$0xff] %v1126
        %1159 = vst [vmem:[%s218 + $0x30] sm:$0xff] %v1127
        %1160 = vst [vmem:[%s218 + $0x38] sm:$0xff] %v1128
        %1161 = vst [vmem:[%s218 + $0x40] sm:$0xff] %v1129
        %1162 = vst [vmem:[%s218 + $0x48] sm:$0xff] %v1130
        %1163 = vst [vmem:[%s218 + $0x50] sm:$0xff] %v1131
        %1164 = vst [vmem:[%s218 + $0x58] sm:$0xff] %v1132
        %1165 = vst [vmem:[%s218 + $0x60] sm:$0xff] %v1133
        %1166 = vst [vmem:[%s218 + $0x68] sm:$0xff] %v1134
        %1167 = vst [vmem:[%s218 + $0x70] sm:$0xff] %v1135
        %1168 = vst [vmem:[%s218 + $0x78] sm:$0xff] %v1136
        %1169 = vst [vmem:[%s218 + $0x80] sm:$0xff] %v1137
        %1170 = vst [vmem:[%s218 + $0x88] sm:$0xff] %v1138
        %1171 = vst [vmem:[%s218 + $0x90] sm:$0xff] %v1139
        %1172 = vst [vmem:[%s218 + $0x98] sm:$0xff] %v1140
        %1173 = vst [vmem:[%s218 + $0xa0] sm:$0xff] %v1141
        %1174 = vst [vmem:[%s218 + $0xa8] sm:$0xff] %v1142
        %1175 = vst [vmem:[%s218 + $0xb0] sm:$0xff] %v1143
        %1176 = vst [vmem:[%s218 + $0xb8] sm:$0xff] %v1144
        %1177 = vst [vmem:[%s218 + $0xc0] sm:$0xff] %v1145
        %1178 = vst [vmem:[%s218 + $0xc8] sm:$0xff] %v1146
        %1179 = vst [vmem:[%s218 + $0xd0] sm:$0xff] %v1147
        %1180 = vst [vmem:[%s218 + $0xd8] sm:$0xff] %v1148
        %1181 = vst [vmem:[%s218 + $0xe0] sm:$0xff] %v1149
        %1182 = vst [vmem:[%s218 + $0xe8] sm:$0xff] %v1150
        %1183 = vst [vmem:[%s218 + $0xf0] sm:$0xff] %v1151
        %1184 = vst [vmem:[%s218 + $0xf8] sm:$0xff] %v1152
        %s1185 = sand.u32 %s137, 1
        %s1186 = scalar_lea.sflag [#allocation3], %s1185
        %s1187 = sand.u32 %s137, 1
        %s1188 = smul.addr %s1187, 256
        %s1189 = scalar_lea.vmem [#allocation2], %s1188
        // Predicated region
        $region41: #{tpu_custom_call.1} parent=39 // pred_check
          %p1190 = pneg %p147
        $region42: #{tpu_custom_call.1} parent=39 // pred_check_branch
          %1192 = sbr.rel (%p1190) target = $region44
        $region43: #{tpu_custom_call.1} parent=39 // pred_region
          %s1193 = smul.u32 32, %s19
          %1195 = vsyncadd %s1186, 0
          %s1196 = smul.addr %s1193, 8
          %s1197 = scalar_lea.hbm %s5, %s1196
          %s1198 = sshll.u32 %s1189, 4
          %s1199 = int_to_ptr.vmem [resolvable:$true] %s1198
          %s1200 = sshll.u32 %s1197, 4
          %s1201 = int_to_ptr.hbm [resolvable:$true] %s1200
          %1206 = dma.vmem_to_hbm [thread:$0]  %s1199, 4096, %s1201, %s1186, 128, 128, 8
        $region44: #{tpu_custom_call.1} parent=39 // pred_fallthru
          _
      $region40: #{tpu_custom_call.1} parent=5 // pred_fallthru
        _
      %p1207 = scmp.le.s32.totalorder 2, %s14
      // Predicated region
      $region45: #{tpu_custom_call.1} parent=5 // pred_check
        %p1208 = pneg %p1207
      $region46: #{tpu_custom_call.1} parent=5 // pred_check_branch
        %1210 = sbr.rel (%p1208) target = $region48
      $region47: #{tpu_custom_call.1} parent=5 // pred_region
        %s1211 = ssub.s32 %s14, 2
        // Predicated region
        $region49: #{tpu_custom_call.1} parent=47 // pred_check
          %p1212 = pneg %p153
        $region50: #{tpu_custom_call.1} parent=47 // pred_check_branch
          %1214 = sbr.rel (%p1212) target = $region52
        $region51: #{tpu_custom_call.1} parent=47 // pred_region
          %s1215 = sand.u32 %s138, 1
          %s1216 = scalar_lea.sflag [#allocation3], %s1215
          %s1217 = sand.u32 %s138, 1
          %s1218 = smul.addr %s1217, 256
          %s1219 = scalar_lea.vmem [#allocation2], %s1218
          %1221 = dma.done %s1216, 4096
        $region52: #{tpu_custom_call.1} parent=47 // pred_fallthru
          _
      $region48: #{tpu_custom_call.1} parent=5 // pred_fallthru
        _
    $region6: #{tpu_custom_call.1} parent=1 // loop_footer
      %s18 = sadd.s32 1, %s14
    $region7: #{tpu_custom_call.1} parent=1 // loop_footer_branch
      %13 = sbr.rel target = $region3
    $region8: #{tpu_custom_call.1} parent=1 // loop_exit
      _
    %1222 = vsyncpa [#allocation3], 1
    %s1223 = scalar_lea.sflag [#allocation3], 1
    %1224 = vsyncpa %s1223, 1

// kernel: tpu_custom_call.1
$region0: #{tpu_custom_call.1}
  #allocation0 [shape = 'u32[]', space=smem, size = 0x4, offset = 0x4, fixed_abs, tag = 'smem constant byte address 0x4 - core index']
  #allocation1 [shape = 'u32[72,128]{1,0:T(1,128)}', space=vmem, size = 0x9000, scoped, tag = 'internal scratch']
  %s0 = inlined_call_operand.vmem [shape: f32[512,32], index: 0, kind: input, shape index: {}]
  %s1 = inlined_call_operand.vmem [shape: f32[32,128], index: 1, kind: input, shape index: {}]
  %s2 = inlined_call_operand.vmem [shape: f32[1,128], index: 2, kind: input, shape index: {}]
  %s3 = inlined_call_operand.vmem [shape: f32[128,128], index: 3, kind: input, shape index: {}]
  %s4 = inlined_call_operand.vmem [shape: f32[1,128], index: 4, kind: input, shape index: {}]
  %s5 = inlined_call_operand.hbm [shape: f32[512,128], index: 5, kind: output, shape index: {}]
  %s6 = sld [smem:[#allocation0]]
  $region53: #{tpu_custom_call.1} parent=0
    _
  %s8 = ssub.s32 1, %s6
  %s9 = scalar_select 0, %s8, %s6
  $region1: #{tpu_custom_call.1} parent=0
    #allocation2 [shape = 'u8[262144]{0}', space=vmem, size = 0x40000, scoped, tag = 'output window, operand 0']
    #allocation3 [shape = 's32[2]{0}', space=sflag, size = 0x8, scoped, tag = 'scoped memory for tpu_custom_call.1']
    %10 = vsyncpa [#allocation3], 0
    %s11 = scalar_lea.sflag [#allocation3], 1
    %12 = vsyncpa %s11, 0
    loop: start=0, step=1, limit=4
    $region2: #{tpu_custom_call.1} parent=1 // loop_pre_header
      _
    $region3: #{tpu_custom_call.1} parent=1 // loop_header
      %s14 = sphi 0, %s18
      %p15 = scmp.ge.s32.totalorder %s14, 4
      %s24 = sphi 0, %s26
      %s27 = sphi 0, %s24
      %s28 = sphi 0, %s27
      %s44 = sphi 0, %s28
      %s48 = sphi 0, %s48
      %s50 = sphi 0, %s48
      %s51 = sphi 0, %s50
      %s65 = sphi 0, %s51
      %s69 = sphi 0, %s69
      %s71 = sphi 0, %s69
      %s72 = sphi 0, %s71
      %s86 = sphi 0, %s72
      %s90 = sphi 0, %s90
      %s92 = sphi 0, %s90
      %s93 = sphi 0, %s92
      %s107 = sphi 0, %s93
      %s111 = sphi 0, %s111
      %s113 = sphi 0, %s111
      %s114 = sphi 0, %s113
      %s128 = sphi 0, %s114
      %s134 = sphi 0, %s136
      %s137 = sphi 0, %s134
      %s138 = sphi 0, %s137
      %s154 = sphi 0, %s138
    $region4: #{tpu_custom_call.1} parent=1 // loop_header_branch
      %17 = sbr.rel (%p15) target = $region8
    $region5: #{tpu_custom_call.1} parent=1 // loop_body
      %s19 = ssub.s32 %s14, 1
      %s20 = ssub.s32 %s14, 2
      %s21 = sadd.s32 %s14, 1
      %s22 = ssub.s32 %s14, %s21
      %p23 = scmp.eq.s32.totalorder %s22, 0
      %s25 = sadd.s32 %s24, 1
      %s26 = scalar_select %p23, %s24, %s25
      %p29 = pneg %p23
      %p30 = scmp.eq.s32.totalorder %s14, 1
      %p31 = por %p29, %p30
      %p32 = scmp.ne.s32.totalorder %s24, %s27
      %p33 = scmp.eq.s32.totalorder %s14, 0
      %p34 = por %p32, %p33
      %p35 = scmp.ne.s32.totalorder %s24, %s27
      %p36 = scmp.eq.s32.totalorder %s19, 1
      %p37 = por %p35, %p36
      %p38 = scmp.ne.s32.totalorder %s27, %s28
      %p39 = scmp.eq.s32.totalorder %s19, 0
      %p40 = por %p38, %p39
      %p41 = scmp.ne.s32.totalorder %s27, %s28
      %p42 = scmp.eq.s32.totalorder %s20, 1
      %p43 = por %p41, %p42
      %p45 = scmp.ne.s32.totalorder %s28, %s44
      %p46 = scmp.eq.s32.totalorder %s20, 0
      %p47 = por %p45, %p46
      %s49 = sadd.s32 %s48, 1
      %p52 = scmp.eq.s32.totalorder %s14, 1
      %p53 = scmp.ne.s32.totalorder %s48, %s50
      %p54 = scmp.eq.s32.totalorder %s14, 0
      %p55 = por %p53, %p54
      %p56 = scmp.ne.s32.totalorder %s48, %s50
      %p57 = scmp.eq.s32.totalorder %s19, 1
      %p58 = por %p56, %p57
      %p59 = scmp.ne.s32.totalorder %s50, %s51
      %p60 = scmp.eq.s32.totalorder %s19, 0
      %p61 = por %p59, %p60
      %p62 = scmp.ne.s32.totalorder %s50, %s51
      %p63 = scmp.eq.s32.totalorder %s20, 1
      %p64 = por %p62, %p63
      %p66 = scmp.ne.s32.totalorder %s51, %s65
      %p67 = scmp.eq.s32.totalorder %s20, 0
      %p68 = por %p66, %p67
      %s70 = sadd.s32 %s69, 1
      %p73 = scmp.eq.s32.totalorder %s14, 1
      %p74 = scmp.ne.s32.totalorder %s69, %s71
      %p75 = scmp.eq.s32.totalorder %s14, 0
      %p76 = por %p74, %p75
      %p77 = scmp.ne.s32.totalorder %s69, %s71
      %p78 = scmp.eq.s32.totalorder %s19, 1
      %p79 = por %p77, %p78
      %p80 = scmp.ne.s32.totalorder %s71, %s72
      %p81 = scmp.eq.s32.totalorder %s19, 0
      %p82 = por %p80, %p81
      %p83 = scmp.ne.s32.totalorder %s71, %s72
      %p84 = scmp.eq.s32.totalorder %s20, 1
      %p85 = por %p83, %p84
      %p87 = scmp.ne.s32.totalorder %s72, %s86
      %p88 = scmp.eq.s32.totalorder %s20, 0
      %p89 = por %p87, %p88
      %s91 = sadd.s32 %s90, 1
      %p94 = scmp.eq.s32.totalorder %s14, 1
      %p95 = scmp.ne.s32.totalorder %s90, %s92
      %p96 = scmp.eq.s32.totalorder %s14, 0
      %p97 = por %p95, %p96
      %p98 = scmp.ne.s32.totalorder %s90, %s92
      %p99 = scmp.eq.s32.totalorder %s19, 1
      %p100 = por %p98, %p99
      %p101 = scmp.ne.s32.totalorder %s92, %s93
      %p102 = scmp.eq.s32.totalorder %s19, 0
      %p103 = por %p101, %p102
      %p104 = scmp.ne.s32.totalorder %s92, %s93
      %p105 = scmp.eq.s32.totalorder %s20, 1
      %p106 = por %p104, %p105
      %p108 = scmp.ne.s32.totalorder %s93, %s107
      %p109 = scmp.eq.s32.totalorder %s20, 0
      %p110 = por %p108, %p109
      %s112 = sadd.s32 %s111, 1
      %p115 = scmp.eq.s32.totalorder %s14, 1
      %p116 = scmp.ne.s32.totalorder %s111, %s113
      %p117 = scmp.eq.s32.totalorder %s14, 0
      %p118 = por %p116, %p117
      %p119 = scmp.ne.s32.totalorder %s111, %s113
      %p120 = scmp.eq.s32.totalorder %s19, 1
      %p121 = por %p119, %p120
      %p122 = scmp.ne.s32.totalorder %s113, %s114
      %p123 = scmp.eq.s32.totalorder %s19, 0
      %p124 = por %p122, %p123
      %p125 = scmp.ne.s32.totalorder %s113, %s114
      %p126 = scmp.eq.s32.totalorder %s20, 1
      %p127 = por %p125, %p126
      %p129 = scmp.ne.s32.totalorder %s114, %s128
      %p130 = scmp.eq.s32.totalorder %s20, 0
      %p131 = por %p129, %p130
      %s132 = ssub.s32 %s14, %s21
      %p133 = scmp.eq.s32.totalorder %s132, 0
      %s135 = sadd.s32 %s134, 1
      %s136 = scalar_select %p133, %s134, %s135
      %p139 = pneg %p133
      %p140 = scmp.eq.s32.totalorder %s14, 1
      %p141 = por %p139, %p140
      %p142 = scmp.ne.s32.totalorder %s134, %s137
      %p143 = scmp.eq.s32.totalorder %s14, 0
      %p144 = por %p142, %p143
      %p145 = scmp.ne.s32.totalorder %s134, %s137
      %p146 = scmp.eq.s32.totalorder %s19, 1
      %p147 = por %p145, %p146
      %p148 = scmp.ne.s32.totalorder %s137, %s138
      %p149 = scmp.eq.s32.totalorder %s19, 0
      %p150 = por %p148, %p149
      %p151 = scmp.ne.s32.totalorder %s137, %s138
      %p152 = scmp.eq.s32.totalorder %s20, 1
      %p153 = por %p151, %p152
      %p155 = scmp.ne.s32.totalorder %s138, %s154
      %p156 = scmp.eq.s32.totalorder %s20, 0
      %p157 = por %p155, %p156
      %p158 = scmp.le.s32.totalorder 1, %s14
      %p159 = scmp.lt.s32.totalorder %s14, 3
      %p160 = pnand %p158, %p159
      %p161 = pneg %p160
      // Predicated region
      $region9: #{tpu_custom_call.1} parent=5 // pred_check
        _
      $region10: #{tpu_custom_call.1} parent=5 // pred_check_branch
        %163 = sbr.rel (%p160) target = $region12
      $region11: #{tpu_custom_call.1} parent=5 // pred_region
        %s164 = ssub.s32 %s14, 1
        // Predicated region
        $region13: #{tpu_custom_call.1} parent=11 // pred_check
          %p165 = pneg %p61
        $region14: #{tpu_custom_call.1} parent=11 // pred_check_branch
          %167 = sbr.rel (%p165) target = $region16
        $region15: #{tpu_custom_call.1} parent=11 // pred_region
          _
        $region16: #{tpu_custom_call.1} parent=11 // pred_fallthru
          _
        // Predicated region
        $region17: #{tpu_custom_call.1} parent=11 // pred_check
          %p168 = pneg %p82
        $region18: #{tpu_custom_call.1} parent=11 // pred_check_branch
          %170 = sbr.rel (%p168) target = $region20
        $region19: #{tpu_custom_call.1} parent=11 // pred_region
          _
        $region20: #{tpu_custom_call.1} parent=11 // pred_fallthru
          _
        // Predicated region
        $region21: #{tpu_custom_call.1} parent=11 // pred_check
          %p171 = pneg %p103
        $region22: #{tpu_custom_call.1} parent=11 // pred_check_branch
          %173 = sbr.rel (%p171) target = $region24
        $region23: #{tpu_custom_call.1} parent=11 // pred_region
          _
        $region24: #{tpu_custom_call.1} parent=11 // pred_fallthru
          _
        // Predicated region
        $region25: #{tpu_custom_call.1} parent=11 // pred_check
          %p174 = pneg %p124
        $region26: #{tpu_custom_call.1} parent=11 // pred_check_branch
          %176 = sbr.rel (%p174) target = $region28
        $region27: #{tpu_custom_call.1} parent=11 // pred_region
          _
        $region28: #{tpu_custom_call.1} parent=11 // pred_fallthru
          _
      $region12: #{tpu_custom_call.1} parent=5 // pred_fallthru
        _
      %p177 = scmp.lt.s32.totalorder %s14, 2
      // Predicated region
      $region29: #{tpu_custom_call.1} parent=5 // pred_check
        %p178 = pneg %p177
      $region30: #{tpu_custom_call.1} parent=5 // pred_check_branch
        %180 = sbr.rel (%p178) target = $region32
      $region31: #{tpu_custom_call.1} parent=5 // pred_region
        // Predicated region
        $region33: #{tpu_custom_call.1} parent=31 // pred_check
          %p181 = pneg %p34
        $region34: #{tpu_custom_call.1} parent=31 // pred_check_branch
          %183 = sbr.rel (%p181) target = $region36
        $region35: #{tpu_custom_call.1} parent=31 // pred_region
          %s184 = smul.u32 32, %s14
          %p185 = scmp.lt.s32.totalorder %s184, 63
          %s186 = scalar_select %p185, %s184, 63
          %s187 = smul.addr %s186, 8
          %s188 = scalar_lea.vmem %s0, %s187
          %s189 = smul.u32 32, %s14
        $region36: #{tpu_custom_call.1} parent=31 // pred_fallthru
          _
      $region32: #{tpu_custom_call.1} parent=5 // pred_fallthru
        _
      %p190 = scmp.le.s32.totalorder 1, %s14
      %p191 = scmp.lt.s32.totalorder %s14, 3
      %p192 = pnand %p190, %p191
      %p193 = pneg %p192
      // Predicated region
      $region37: #{tpu_custom_call.1} parent=5 // pred_check
        _
      $region38: #{tpu_custom_call.1} parent=5 // pred_check_branch
        %195 = sbr.rel (%p192) target = $region40
      $region39: #{tpu_custom_call.1} parent=5 // pred_region
        %s196 = ssub.s32 %s14, 1
        %s197 = smul.u32 32, %s19
        %p198 = scmp.lt.s32.totalorder %s197, 63
        %s199 = scalar_select %p198, %s197, 63
        %s200 = smul.addr %s199, 8
        %s201 = scalar_lea.vmem %s0, %s200
        %p202 = pneg %p40
        %p203 = pneg %p37
        %p204 = pneg %p61
        %p205 = pneg %p58
        %p206 = pneg %p82
        %p207 = pneg %p79
        %p208 = pneg %p103
        %p209 = pneg %p100
        %p210 = pneg %p124
        %p211 = pneg %p121
        %p212 = pneg %p150
        %p213 = pneg %p147
        %s214 = sand.u32 %s137, 1
        %s215 = scalar_lea.sflag [#allocation3], %s214
        %s216 = sand.u32 %s137, 1
        %s217 = smul.addr %s216, 256
        %s218 = scalar_lea.vmem [#allocation2], %s217
        %s219 = smul.u32 32, %s19
        %p220 = scmp.lt.s32.totalorder %s219, 63
        %s221 = scalar_select %p220, %s219, 63
        %s222 = smul.addr %s221, 8
        %s223 = scalar_lea.vmem %s0, %s222
        %s224 = smul.u32 32, %s19
        %s225 = smul.u32 32, %s19
        %v226 = vld [vmem:[%s223] sm:$0xff]
        %v227 = vld [vmem:[%s223 + $0x8] sm:$0xff]
        %v228 = vld [vmem:[%s223 + $0x10] sm:$0xff]
        %v229 = vld [vmem:[%s223 + $0x18] sm:$0xff]
        %v230 = vld [vmem:[%s223 + $0x20] sm:$0xff]
        %v231 = vld [vmem:[%s223 + $0x28] sm:$0xff]
        %v232 = vld [vmem:[%s223 + $0x30] sm:$0xff]
        %v233 = vld [vmem:[%s223 + $0x38] sm:$0xff]
        %v234 = vld [vmem:[%s223 + $0x40] sm:$0xff]
        %v235 = vld [vmem:[%s223 + $0x48] sm:$0xff]
        %v236 = vld [vmem:[%s223 + $0x50] sm:$0xff]
        %v237 = vld [vmem:[%s223 + $0x58] sm:$0xff]
        %v238 = vld [vmem:[%s223 + $0x60] sm:$0xff]
        %v239 = vld [vmem:[%s223 + $0x68] sm:$0xff]
        %v240 = vld [vmem:[%s223 + $0x70] sm:$0xff]
        %v241 = vld [vmem:[%s223 + $0x78] sm:$0xff]
        %v242 = vld [vmem:[%s223 + $0x80] sm:$0xff]
        %v243 = vld [vmem:[%s223 + $0x88] sm:$0xff]
        %v244 = vld [vmem:[%s223 + $0x90] sm:$0xff]
        %v245 = vld [vmem:[%s223 + $0x98] sm:$0xff]
        %v246 = vld [vmem:[%s223 + $0xa0] sm:$0xff]
        %v247 = vld [vmem:[%s223 + $0xa8] sm:$0xff]
        %v248 = vld [vmem:[%s223 + $0xb0] sm:$0xff]
        %v249 = vld [vmem:[%s223 + $0xb8] sm:$0xff]
        %v250 = vld [vmem:[%s223 + $0xc0] sm:$0xff]
        %v251 = vld [vmem:[%s223 + $0xc8] sm:$0xff]
        %v252 = vld [vmem:[%s223 + $0xd0] sm:$0xff]
        %v253 = vld [vmem:[%s223 + $0xd8] sm:$0xff]
        %v254 = vld [vmem:[%s223 + $0xe0] sm:$0xff]
        %v255 = vld [vmem:[%s223 + $0xe8] sm:$0xff]
        %v256 = vld [vmem:[%s223 + $0xf0] sm:$0xff]
        %v257 = vld [vmem:[%s223 + $0xf8] sm:$0xff]
        %v258 = vld [vmem:[%s1] sm:$0xff]
        %v259 = vld [vmem:[%s1 + $0x8] sm:$0xff]
        %v260 = vld [vmem:[%s1 + $0x10] sm:$0xff]
        %v261 = vld [vmem:[%s1 + $0x18] sm:$0xff]
        %v262 = vld [vmem:[%s2] sm:$0x1]
        %v264 = vperm.slane %v262, 0
        %vm266 = vcmask 261120
        %v268 = vsel %vm266, %v226, 0
        %v271 = vsel %vm266, %v227, 0
        %v274 = vsel %vm266, %v228, 0
        %v277 = vsel %vm266, %v229, 0
        %v280 = vsel %vm266, %v230, 0
        %v283 = vsel %vm266, %v231, 0
        %v286 = vsel %vm266, %v232, 0
        %v289 = vsel %vm266, %v233, 0
        %v292 = vsel %vm266, %v234, 0
        %v295 = vsel %vm266, %v235, 0
        %v298 = vsel %vm266, %v236, 0
        %v301 = vsel %vm266, %v237, 0
        %v304 = vsel %vm266, %v238, 0
        %v307 = vsel %vm266, %v239, 0
        %v310 = vsel %vm266, %v240, 0
        %v313 = vsel %vm266, %v241, 0
        %v316 = vsel %vm266, %v242, 0
        %v319 = vsel %vm266, %v243, 0
        %v322 = vsel %vm266, %v244, 0
        %v325 = vsel %vm266, %v245, 0
        %v328 = vsel %vm266, %v246, 0
        %v331 = vsel %vm266, %v247, 0
        %v334 = vsel %vm266, %v248, 0
        %v337 = vsel %vm266, %v249, 0
        %v340 = vsel %vm266, %v250, 0
        %v343 = vsel %vm266, %v251, 0
        %v346 = vsel %vm266, %v252, 0
        %v349 = vsel %vm266, %v253, 0
        %v352 = vsel %vm266, %v254, 0
        %v355 = vsel %vm266, %v255, 0
        %v358 = vsel %vm266, %v256, 0
        %v361 = vsel %vm266, %v257, 0
        %363 = vmatpush.msra.mxu0 0.0
        %364 = vmatpush.msra.mxu0 0.0
        %365 = vmatpush.msra.mxu0 0.0
        %366 = vmatpush.msra.mxu0 0.0
        %367 = vmatpush.msra.mxu0 0.0
        %368 = vmatpush.msra.mxu0 0.0
        %369 = vmatpush.msra.mxu0 0.0
        %370 = vmatpush.msra.mxu0 0.0
        %371 = vmatpush.msra.mxu0 0.0
        %372 = vmatpush.msra.mxu0 0.0
        %373 = vmatpush.msra.mxu0 0.0
        %374 = vmatpush.msra.mxu0 0.0
        %375 = vmatpush.msra.mxu0 %v261
        %376 = vmatpush.msra.mxu0 %v260
        %377 = vmatpush.msra.mxu0 %v259
        %378 = vmatpush.msra.mxu0 %v258
        %379 = vmatmul.f32.gmra.mxu0 %v268
        %v380 = vpop.f32.mrf.mxu0
        %v381 = vadd.f32 %v264, %v380
        %382 = vmatmul.f32.gmra.mxu0 %v271
        %v383 = vpop.f32.mrf.mxu0
        %v384 = vadd.f32 %v264, %v383
        %385 = vmatmul.f32.gmra.mxu0 %v274
        %v386 = vpop.f32.mrf.mxu0
        %v387 = vadd.f32 %v264, %v386
        %388 = vmatmul.f32.gmra.mxu0 %v277
        %v389 = vpop.f32.mrf.mxu0
        %v390 = vadd.f32 %v264, %v389
        %391 = vmatmul.f32.gmra.mxu0 %v280
        %v392 = vpop.f32.mrf.mxu0
        %v393 = vadd.f32 %v264, %v392
        %394 = vmatmul.f32.gmra.mxu0 %v283
        %v395 = vpop.f32.mrf.mxu0
        %v396 = vadd.f32 %v264, %v395
        %397 = vmatmul.f32.gmra.mxu0 %v286
        %v398 = vpop.f32.mrf.mxu0
        %v399 = vadd.f32 %v264, %v398
        %400 = vmatmul.f32.gmra.mxu0 %v289
        %v401 = vpop.f32.mrf.mxu0
        %v402 = vadd.f32 %v264, %v401
        %403 = vmatmul.f32.gmra.mxu0 %v292
        %v404 = vpop.f32.mrf.mxu0
        %v405 = vadd.f32 %v264, %v404
        %406 = vmatmul.f32.gmra.mxu0 %v295
        %v407 = vpop.f32.mrf.mxu0
        %v408 = vadd.f32 %v264, %v407
        %409 = vmatmul.f32.gmra.mxu0 %v298
        %v410 = vpop.f32.mrf.mxu0
        %v411 = vadd.f32 %v264, %v410
        %412 = vmatmul.f32.gmra.mxu0 %v301
        %v413 = vpop.f32.mrf.mxu0
        %v414 = vadd.f32 %v264, %v413
        %415 = vmatmul.f32.gmra.mxu0 %v304
        %v416 = vpop.f32.mrf.mxu0
        %v417 = vadd.f32 %v264, %v416
        %418 = vmatmul.f32.gmra.mxu0 %v307
        %v419 = vpop.f32.mrf.mxu0
        %v420 = vadd.f32 %v264, %v419
        %421 = vmatmul.f32.gmra.mxu0 %v310
        %v422 = vpop.f32.mrf.mxu0
        %v423 = vadd.f32 %v264, %v422
        %424 = vmatmul.f32.gmra.mxu0 %v313
        %v425 = vpop.f32.mrf.mxu0
        %v426 = vadd.f32 %v264, %v425
        %427 = vmatmul.f32.gmra.mxu0 %v316
        %v428 = vpop.f32.mrf.mxu0
        %v429 = vadd.f32 %v264, %v428
        %430 = vmatmul.f32.gmra.mxu0 %v319
        %v431 = vpop.f32.mrf.mxu0
        %v432 = vadd.f32 %v264, %v431
        %433 = vmatmul.f32.gmra.mxu0 %v322
        %v434 = vpop.f32.mrf.mxu0
        %v435 = vadd.f32 %v264, %v434
        %436 = vmatmul.f32.gmra.mxu0 %v325
        %v437 = vpop.f32.mrf.mxu0
        %v438 = vadd.f32 %v264, %v437
        %439 = vmatmul.f32.gmra.mxu0 %v328
        %v440 = vpop.f32.mrf.mxu0
        %v441 = vadd.f32 %v264, %v440
        %442 = vmatmul.f32.gmra.mxu0 %v331
        %v443 = vpop.f32.mrf.mxu0
        %v444 = vadd.f32 %v264, %v443
        %445 = vmatmul.f32.gmra.mxu0 %v334
        %v446 = vpop.f32.mrf.mxu0
        %v447 = vadd.f32 %v264, %v446
        %448 = vmatmul.f32.gmra.mxu0 %v337
        %v449 = vpop.f32.mrf.mxu0
        %v450 = vadd.f32 %v264, %v449
        %451 = vmatmul.f32.gmra.mxu0 %v340
        %v452 = vpop.f32.mrf.mxu0
        %v453 = vadd.f32 %v264, %v452
        %454 = vmatmul.f32.gmra.mxu0 %v343
        %v455 = vpop.f32.mrf.mxu0
        %v456 = vadd.f32 %v264, %v455
        %457 = vmatmul.f32.gmra.mxu0 %v346
        %v458 = vpop.f32.mrf.mxu0
        %v459 = vadd.f32 %v264, %v458
        %460 = vmatmul.f32.gmra.mxu0 %v349
        %v461 = vpop.f32.mrf.mxu0
        %v462 = vadd.f32 %v264, %v461
        %463 = vmatmul.f32.gmra.mxu0 %v352
        %v464 = vpop.f32.mrf.mxu0
        %v465 = vadd.f32 %v264, %v464
        %466 = vmatmul.f32.gmra.mxu0 %v355
        %v467 = vpop.f32.mrf.mxu0
        %v468 = vadd.f32 %v264, %v467
        %469 = vmatmul.f32.gmra.mxu0 %v358
        %v470 = vpop.f32.mrf.mxu0
        %v471 = vadd.f32 %v264, %v470
        %472 = vmatmul.f32.gmra.mxu0 %v361
        %v473 = vpop.f32.mrf.mxu0
        %v474 = vadd.f32 %v264, %v473
        %475 = vdwg.mxu0
        %v476 = vmax.f32 %v381, 0.0
        %v477 = vmax.f32 %v384, 0.0
        %v478 = vmax.f32 %v387, 0.0
        %v479 = vmax.f32 %v390, 0.0
        %v480 = vmax.f32 %v393, 0.0
        %v481 = vmax.f32 %v396, 0.0
        %v482 = vmax.f32 %v399, 0.0
        %v483 = vmax.f32 %v402, 0.0
        %v484 = vmax.f32 %v405, 0.0
        %v485 = vmax.f32 %v408, 0.0
        %v486 = vmax.f32 %v411, 0.0
        %v487 = vmax.f32 %v414, 0.0
        %v488 = vmax.f32 %v417, 0.0
        %v489 = vmax.f32 %v420, 0.0
        %v490 = vmax.f32 %v423, 0.0
        %v491 = vmax.f32 %v426, 0.0
        %v492 = vmax.f32 %v429, 0.0
        %v493 = vmax.f32 %v432, 0.0
        %v494 = vmax.f32 %v435, 0.0
        %v495 = vmax.f32 %v438, 0.0
        %v496 = vmax.f32 %v441, 0.0
        %v497 = vmax.f32 %v444, 0.0
        %v498 = vmax.f32 %v447, 0.0
        %v499 = vmax.f32 %v450, 0.0
        %v500 = vmax.f32 %v453, 0.0
        %v501 = vmax.f32 %v456, 0.0
        %v502 = vmax.f32 %v459, 0.0
        %v503 = vmax.f32 %v462, 0.0
        %v504 = vmax.f32 %v465, 0.0
        %v505 = vmax.f32 %v468, 0.0
        %v506 = vmax.f32 %v471, 0.0
        %v507 = vmax.f32 %v474, 0.0
        %v508 = vld [vmem:[%s3] sm:$0xff]
        %v509 = vld [vmem:[%s3 + $0x8] sm:$0xff]
        %v510 = vld [vmem:[%s3 + $0x10] sm:$0xff]
        %v511 = vld [vmem:[%s3 + $0x18] sm:$0xff]
        %v512 = vld [vmem:[%s3 + $0x20] sm:$0xff]
        %v513 = vld [vmem:[%s3 + $0x28] sm:$0xff]
        %v514 = vld [vmem:[%s3 + $0x30] sm:$0xff]
        %v515 = vld [vmem:[%s3 + $0x38] sm:$0xff]
        %v516 = vld [vmem:[%s3 + $0x40] sm:$0xff]
        %v517 = vld [vmem:[%s3 + $0x48] sm:$0xff]
        %v518 = vld [vmem:[%s3 + $0x50] sm:$0xff]
        %v519 = vld [vmem:[%s3 + $0x58] sm:$0xff]
        %v520 = vld [vmem:[%s3 + $0x60] sm:$0xff]
        %v521 = vld [vmem:[%s3 + $0x68] sm:$0xff]
        %v522 = vld [vmem:[%s3 + $0x70] sm:$0xff]
        %v523 = vld [vmem:[%s3 + $0x78] sm:$0xff]
        %v524 = vld [vmem:[%s4] sm:$0x1]
        %v526 = vperm.slane %v524, 0
        %528 = vmatpush.msra.mxu0 %v523
        %529 = vmatpush.msra.mxu0 %v522
        %530 = vmatpush.msra.mxu0 %v521
        %531 = vmatpush.msra.mxu0 %v520
        %532 = vmatpush.msra.mxu0 %v519
        %533 = vmatpush.msra.mxu0 %v518
        %534 = vmatpush.msra.mxu0 %v517
        %535 = vmatpush.msra.mxu0 %v516
        %536 = vmatpush.msra.mxu0 %v515
        %537 = vmatpush.msra.mxu0 %v514
        %538 = vmatpush.msra.mxu0 %v513
        %539 = vmatpush.msra.mxu0 %v512
        %540 = vmatpush.msra.mxu0 %v511
        %541 = vmatpush.msra.mxu0 %v510
        %542 = vmatpush.msra.mxu0 %v509
        %543 = vmatpush.msra.mxu0 %v508
        %544 = vmatmul.f32.gmra.mxu0 %v476
        %v545 = vpop.f32.mrf.mxu0
        %v546 = vadd.f32 %v526, %v545
        %547 = vmatmul.f32.gmra.mxu0 %v477
        %v548 = vpop.f32.mrf.mxu0
        %v549 = vadd.f32 %v526, %v548
        %550 = vmatmul.f32.gmra.mxu0 %v478
        %v551 = vpop.f32.mrf.mxu0
        %v552 = vadd.f32 %v526, %v551
        %553 = vmatmul.f32.gmra.mxu0 %v479
        %v554 = vpop.f32.mrf.mxu0
        %v555 = vadd.f32 %v526, %v554
        %556 = vmatmul.f32.gmra.mxu0 %v480
        %v557 = vpop.f32.mrf.mxu0
        %v558 = vadd.f32 %v526, %v557
        %559 = vmatmul.f32.gmra.mxu0 %v481
        %v560 = vpop.f32.mrf.mxu0
        %v561 = vadd.f32 %v526, %v560
        %562 = vmatmul.f32.gmra.mxu0 %v482
        %v563 = vpop.f32.mrf.mxu0
        %v564 = vadd.f32 %v526, %v563
        %565 = vmatmul.f32.gmra.mxu0 %v483
        %v566 = vpop.f32.mrf.mxu0
        %v567 = vadd.f32 %v526, %v566
        %568 = vmatmul.f32.gmra.mxu0 %v484
        %v569 = vpop.f32.mrf.mxu0
        %v570 = vadd.f32 %v526, %v569
        %571 = vmatmul.f32.gmra.mxu0 %v485
        %v572 = vpop.f32.mrf.mxu0
        %v573 = vadd.f32 %v526, %v572
        %574 = vmatmul.f32.gmra.mxu0 %v486
        %v575 = vpop.f32.mrf.mxu0
        %v576 = vadd.f32 %v526, %v575
        %577 = vmatmul.f32.gmra.mxu0 %v487
        %v578 = vpop.f32.mrf.mxu0
        %v579 = vadd.f32 %v526, %v578
        %580 = vmatmul.f32.gmra.mxu0 %v488
        %v581 = vpop.f32.mrf.mxu0
        %v582 = vadd.f32 %v526, %v581
        %583 = vmatmul.f32.gmra.mxu0 %v489
        %v584 = vpop.f32.mrf.mxu0
        %v585 = vadd.f32 %v526, %v584
        %586 = vmatmul.f32.gmra.mxu0 %v490
        %v587 = vpop.f32.mrf.mxu0
        %v588 = vadd.f32 %v526, %v587
        %589 = vmatmul.f32.gmra.mxu0 %v491
        %v590 = vpop.f32.mrf.mxu0
        %v591 = vadd.f32 %v526, %v590
        %592 = vmatmul.f32.gmra.mxu0 %v492
        %v593 = vpop.f32.mrf.mxu0
        %v594 = vadd.f32 %v526, %v593
        %595 = vmatmul.f32.gmra.mxu0 %v493
        %v596 = vpop.f32.mrf.mxu0
        %v597 = vadd.f32 %v526, %v596
        %598 = vmatmul.f32.gmra.mxu0 %v494
        %v599 = vpop.f32.mrf.mxu0
        %v600 = vadd.f32 %v526, %v599
        %601 = vmatmul.f32.gmra.mxu0 %v495
        %v602 = vpop.f32.mrf.mxu0
        %v603 = vadd.f32 %v526, %v602
        %604 = vmatmul.f32.gmra.mxu0 %v496
        %v605 = vpop.f32.mrf.mxu0
        %v606 = vadd.f32 %v526, %v605
        %607 = vmatmul.f32.gmra.mxu0 %v497
        %v608 = vpop.f32.mrf.mxu0
        %v609 = vadd.f32 %v526, %v608
        %610 = vmatmul.f32.gmra.mxu0 %v498
        %v611 = vpop.f32.mrf.mxu0
        %v612 = vadd.f32 %v526, %v611
        %613 = vmatmul.f32.gmra.mxu0 %v499
        %v614 = vpop.f32.mrf.mxu0
        %v615 = vadd.f32 %v526, %v614
        %616 = vmatmul.f32.gmra.mxu0 %v500
        %v617 = vpop.f32.mrf.mxu0
        %v618 = vadd.f32 %v526, %v617
        %619 = vmatmul.f32.gmra.mxu0 %v501
        %v620 = vpop.f32.mrf.mxu0
        %v621 = vadd.f32 %v526, %v620
        %622 = vmatmul.f32.gmra.mxu0 %v502
        %v623 = vpop.f32.mrf.mxu0
        %v624 = vadd.f32 %v526, %v623
        %625 = vmatmul.f32.gmra.mxu0 %v503
        %v626 = vpop.f32.mrf.mxu0
        %v627 = vadd.f32 %v526, %v626
        %628 = vmatmul.f32.gmra.mxu0 %v504
        %v629 = vpop.f32.mrf.mxu0
        %v630 = vadd.f32 %v526, %v629
        %631 = vmatmul.f32.gmra.mxu0 %v505
        %v632 = vpop.f32.mrf.mxu0
        %v633 = vadd.f32 %v526, %v632
        %634 = vmatmul.f32.gmra.mxu0 %v506
        %v635 = vpop.f32.mrf.mxu0
        %v636 = vadd.f32 %v526, %v635
        %637 = vmatmul.f32.gmra.mxu0 %v507
        %v638 = vpop.f32.mrf.mxu0
        %v639 = vadd.f32 %v526, %v638
        %640 = vdwg.mxu0
        %v641 = vmax.f32 %v546, 0.0
        %v642 = vmax.f32 %v549, 0.0
        %v643 = vmax.f32 %v552, 0.0
        %v644 = vmax.f32 %v555, 0.0
        %v645 = vmax.f32 %v558, 0.0
        %v646 = vmax.f32 %v561, 0.0
        %v647 = vmax.f32 %v564, 0.0
        %v648 = vmax.f32 %v567, 0.0
        %v649 = vmax.f32 %v570, 0.0
        %v650 = vmax.f32 %v573, 0.0
        %v651 = vmax.f32 %v576, 0.0
        %v652 = vmax.f32 %v579, 0.0
        %v653 = vmax.f32 %v582, 0.0
        %v654 = vmax.f32 %v585, 0.0
        %v655 = vmax.f32 %v588, 0.0
        %v656 = vmax.f32 %v591, 0.0
        %v657 = vmax.f32 %v594, 0.0
        %v658 = vmax.f32 %v597, 0.0
        %v659 = vmax.f32 %v600, 0.0
        %v660 = vmax.f32 %v603, 0.0
        %v661 = vmax.f32 %v606, 0.0
        %v662 = vmax.f32 %v609, 0.0
        %v663 = vmax.f32 %v612, 0.0
        %v664 = vmax.f32 %v615, 0.0
        %v665 = vmax.f32 %v618, 0.0
        %v666 = vmax.f32 %v621, 0.0
        %v667 = vmax.f32 %v624, 0.0
        %v668 = vmax.f32 %v627, 0.0
        %v669 = vmax.f32 %v630, 0.0
        %v670 = vmax.f32 %v633, 0.0
        %v671 = vmax.f32 %v636, 0.0
        %v672 = vmax.f32 %v639, 0.0
        %v673 = vmul.f32 %v641, %v641
        %v674 = vmul.f32 %v642, %v642
        %v675 = vmul.f32 %v643, %v643
        %v676 = vmul.f32 %v644, %v644
        %v677 = vmul.f32 %v645, %v645
        %v678 = vmul.f32 %v646, %v646
        %v679 = vmul.f32 %v647, %v647
        %v680 = vmul.f32 %v648, %v648
        %v681 = vmul.f32 %v649, %v649
        %v682 = vmul.f32 %v650, %v650
        %v683 = vmul.f32 %v651, %v651
        %v684 = vmul.f32 %v652, %v652
        %v685 = vmul.f32 %v653, %v653
        %v686 = vmul.f32 %v654, %v654
        %v687 = vmul.f32 %v655, %v655
        %v688 = vmul.f32 %v656, %v656
        %v689 = vmul.f32 %v657, %v657
        %v690 = vmul.f32 %v658, %v658
        %v691 = vmul.f32 %v659, %v659
        %v692 = vmul.f32 %v660, %v660
        %v693 = vmul.f32 %v661, %v661
        %v694 = vmul.f32 %v662, %v662
        %v695 = vmul.f32 %v663, %v663
        %v696 = vmul.f32 %v664, %v664
        %v697 = vmul.f32 %v665, %v665
        %v698 = vmul.f32 %v666, %v666
        %v699 = vmul.f32 %v667, %v667
        %v700 = vmul.f32 %v668, %v668
        %v701 = vmul.f32 %v669, %v669
        %v702 = vmul.f32 %v670, %v670
        %v703 = vmul.f32 %v671, %v671
        %v704 = vmul.f32 %v672, %v672
        %705 = vadd.xlane.f32.xlu0 %v673
        %v706 = vpop.xlane.xlu0 %705
        %707 = vadd.xlane.f32.xlu0 %v674
        %v708 = vpop.xlane.xlu0 %707
        %709 = vadd.xlane.f32.xlu0 %v675
        %v710 = vpop.xlane.xlu0 %709
        %711 = vadd.xlane.f32.xlu0 %v676
        %v712 = vpop.xlane.xlu0 %711
        %713 = vadd.xlane.f32.xlu0 %v677
        %v714 = vpop.xlane.xlu0 %713
        %715 = vadd.xlane.f32.xlu0 %v678
        %v716 = vpop.xlane.xlu0 %715
        %717 = vadd.xlane.f32.xlu0 %v679
        %v718 = vpop.xlane.xlu0 %717
        %719 = vadd.xlane.f32.xlu0 %v680
        %v720 = vpop.xlane.xlu0 %719
        %721 = vadd.xlane.f32.xlu0 %v681
        %v722 = vpop.xlane.xlu0 %721
        %723 = vadd.xlane.f32.xlu0 %v682
        %v724 = vpop.xlane.xlu0 %723
        %725 = vadd.xlane.f32.xlu0 %v683
        %v726 = vpop.xlane.xlu0 %725
        %727 = vadd.xlane.f32.xlu0 %v684
        %v728 = vpop.xlane.xlu0 %727
        %729 = vadd.xlane.f32.xlu0 %v685
        %v730 = vpop.xlane.xlu0 %729
        %731 = vadd.xlane.f32.xlu0 %v686
        %v732 = vpop.xlane.xlu0 %731
        %733 = vadd.xlane.f32.xlu0 %v687
        %v734 = vpop.xlane.xlu0 %733
        %735 = vadd.xlane.f32.xlu0 %v688
        %v736 = vpop.xlane.xlu0 %735
        %737 = vadd.xlane.f32.xlu0 %v689
        %v738 = vpop.xlane.xlu0 %737
        %739 = vadd.xlane.f32.xlu0 %v690
        %v740 = vpop.xlane.xlu0 %739
        %741 = vadd.xlane.f32.xlu0 %v691
        %v742 = vpop.xlane.xlu0 %741
        %743 = vadd.xlane.f32.xlu0 %v692
        %v744 = vpop.xlane.xlu0 %743
        %745 = vadd.xlane.f32.xlu0 %v693
        %v746 = vpop.xlane.xlu0 %745
        %747 = vadd.xlane.f32.xlu0 %v694
        %v748 = vpop.xlane.xlu0 %747
        %749 = vadd.xlane.f32.xlu0 %v695
        %v750 = vpop.xlane.xlu0 %749
        %751 = vadd.xlane.f32.xlu0 %v696
        %v752 = vpop.xlane.xlu0 %751
        %753 = vadd.xlane.f32.xlu0 %v697
        %v754 = vpop.xlane.xlu0 %753
        %755 = vadd.xlane.f32.xlu0 %v698
        %v756 = vpop.xlane.xlu0 %755
        %757 = vadd.xlane.f32.xlu0 %v699
        %v758 = vpop.xlane.xlu0 %757
        %759 = vadd.xlane.f32.xlu0 %v700
        %v760 = vpop.xlane.xlu0 %759
        %761 = vadd.xlane.f32.xlu0 %v701
        %v762 = vpop.xlane.xlu0 %761
        %763 = vadd.xlane.f32.xlu0 %v702
        %v764 = vpop.xlane.xlu0 %763
        %765 = vadd.xlane.f32.xlu0 %v703
        %v766 = vpop.xlane.xlu0 %765
        %767 = vadd.xlane.f32.xlu0 %v704
        %v768 = vpop.xlane.xlu0 %767
        %v769 = vmax.f32 %v706, 1e-24
        %v770 = vmax.f32 %v708, 1e-24
        %v771 = vmax.f32 %v710, 1e-24
        %v772 = vmax.f32 %v712, 1e-24
        %v773 = vmax.f32 %v714, 1e-24
        %v774 = vmax.f32 %v716, 1e-24
        %v775 = vmax.f32 %v718, 1e-24
        %v776 = vmax.f32 %v720, 1e-24
        %v777 = vmax.f32 %v722, 1e-24
        %v778 = vmax.f32 %v724, 1e-24
        %v779 = vmax.f32 %v726, 1e-24
        %v780 = vmax.f32 %v728, 1e-24
        %v781 = vmax.f32 %v730, 1e-24
        %v782 = vmax.f32 %v732, 1e-24
        %v783 = vmax.f32 %v734, 1e-24
        %v784 = vmax.f32 %v736, 1e-24
        %v785 = vmax.f32 %v738, 1e-24
        %v786 = vmax.f32 %v740, 1e-24
        %v787 = vmax.f32 %v742, 1e-24
        %v788 = vmax.f32 %v744, 1e-24
        %v789 = vmax.f32 %v746, 1e-24
        %v790 = vmax.f32 %v748, 1e-24
        %v791 = vmax.f32 %v750, 1e-24
        %v792 = vmax.f32 %v752, 1e-24
        %v793 = vmax.f32 %v754, 1e-24
        %v794 = vmax.f32 %v756, 1e-24
        %v795 = vmax.f32 %v758, 1e-24
        %v796 = vmax.f32 %v760, 1e-24
        %v797 = vmax.f32 %v762, 1e-24
        %v798 = vmax.f32 %v764, 1e-24
        %v799 = vmax.f32 %v766, 1e-24
        %v800 = vmax.f32 %v768, 1e-24
        %v801 = vrsqrt.pop %v769
        %v802 = vmul.f32 %v801, %v769
        %v803 = vmul.f32 %v802, %v801
        %v804 = vmul.f32 0.5, %v803
        %v805 = vsub.f32 1.5, %v804
        %v806 = vmul.f32 %v801, %v805
        %vm807 = vweird.f32 %v769
        %vm808 = vweird.f32 %v801
        %vm809 = vmor %vm807, %vm808
        %v810 = vsel %vm809, %v801, %v806
        %v811 = vrsqrt.pop %v770
        %v812 = vmul.f32 %v811, %v770
        %v813 = vmul.f32 %v812, %v811
        %v814 = vmul.f32 0.5, %v813
        %v815 = vsub.f32 1.5, %v814
        %v816 = vmul.f32 %v811, %v815
        %vm817 = vweird.f32 %v770
        %vm818 = vweird.f32 %v811
        %vm819 = vmor %vm817, %vm818
        %v820 = vsel %vm819, %v811, %v816
        %v821 = vrsqrt.pop %v771
        %v822 = vmul.f32 %v821, %v771
        %v823 = vmul.f32 %v822, %v821
        %v824 = vmul.f32 0.5, %v823
        %v825 = vsub.f32 1.5, %v824
        %v826 = vmul.f32 %v821, %v825
        %vm827 = vweird.f32 %v771
        %vm828 = vweird.f32 %v821
        %vm829 = vmor %vm827, %vm828
        %v830 = vsel %vm829, %v821, %v826
        %v831 = vrsqrt.pop %v772
        %v832 = vmul.f32 %v831, %v772
        %v833 = vmul.f32 %v832, %v831
        %v834 = vmul.f32 0.5, %v833
        %v835 = vsub.f32 1.5, %v834
        %v836 = vmul.f32 %v831, %v835
        %vm837 = vweird.f32 %v772
        %vm838 = vweird.f32 %v831
        %vm839 = vmor %vm837, %vm838
        %v840 = vsel %vm839, %v831, %v836
        %v841 = vrsqrt.pop %v773
        %v842 = vmul.f32 %v841, %v773
        %v843 = vmul.f32 %v842, %v841
        %v844 = vmul.f32 0.5, %v843
        %v845 = vsub.f32 1.5, %v844
        %v846 = vmul.f32 %v841, %v845
        %vm847 = vweird.f32 %v773
        %vm848 = vweird.f32 %v841
        %vm849 = vmor %vm847, %vm848
        %v850 = vsel %vm849, %v841, %v846
        %v851 = vrsqrt.pop %v774
        %v852 = vmul.f32 %v851, %v774
        %v853 = vmul.f32 %v852, %v851
        %v854 = vmul.f32 0.5, %v853
        %v855 = vsub.f32 1.5, %v854
        %v856 = vmul.f32 %v851, %v855
        %vm857 = vweird.f32 %v774
        %vm858 = vweird.f32 %v851
        %vm859 = vmor %vm857, %vm858
        %v860 = vsel %vm859, %v851, %v856
        %v861 = vrsqrt.pop %v775
        %v862 = vmul.f32 %v861, %v775
        %v863 = vmul.f32 %v862, %v861
        %v864 = vmul.f32 0.5, %v863
        %v865 = vsub.f32 1.5, %v864
        %v866 = vmul.f32 %v861, %v865
        %vm867 = vweird.f32 %v775
        %vm868 = vweird.f32 %v861
        %vm869 = vmor %vm867, %vm868
        %v870 = vsel %vm869, %v861, %v866
        %v871 = vrsqrt.pop %v776
        %v872 = vmul.f32 %v871, %v776
        %v873 = vmul.f32 %v872, %v871
        %v874 = vmul.f32 0.5, %v873
        %v875 = vsub.f32 1.5, %v874
        %v876 = vmul.f32 %v871, %v875
        %vm877 = vweird.f32 %v776
        %vm878 = vweird.f32 %v871
        %vm879 = vmor %vm877, %vm878
        %v880 = vsel %vm879, %v871, %v876
        %v881 = vrsqrt.pop %v777
        %v882 = vmul.f32 %v881, %v777
        %v883 = vmul.f32 %v882, %v881
        %v884 = vmul.f32 0.5, %v883
        %v885 = vsub.f32 1.5, %v884
        %v886 = vmul.f32 %v881, %v885
        %vm887 = vweird.f32 %v777
        %vm888 = vweird.f32 %v881
        %vm889 = vmor %vm887, %vm888
        %v890 = vsel %vm889, %v881, %v886
        %v891 = vrsqrt.pop %v778
        %v892 = vmul.f32 %v891, %v778
        %v893 = vmul.f32 %v892, %v891
        %v894 = vmul.f32 0.5, %v893
        %v895 = vsub.f32 1.5, %v894
        %v896 = vmul.f32 %v891, %v895
        %vm897 = vweird.f32 %v778
        %vm898 = vweird.f32 %v891
        %vm899 = vmor %vm897, %vm898
        %v900 = vsel %vm899, %v891, %v896
        %v901 = vrsqrt.pop %v779
        %v902 = vmul.f32 %v901, %v779
        %v903 = vmul.f32 %v902, %v901
        %v904 = vmul.f32 0.5, %v903
        %v905 = vsub.f32 1.5, %v904
        %v906 = vmul.f32 %v901, %v905
        %vm907 = vweird.f32 %v779
        %vm908 = vweird.f32 %v901
        %vm909 = vmor %vm907, %vm908
        %v910 = vsel %vm909, %v901, %v906
        %v911 = vrsqrt.pop %v780
        %v912 = vmul.f32 %v911, %v780
        %v913 = vmul.f32 %v912, %v911
        %v914 = vmul.f32 0.5, %v913
        %v915 = vsub.f32 1.5, %v914
        %v916 = vmul.f32 %v911, %v915
        %vm917 = vweird.f32 %v780
        %vm918 = vweird.f32 %v911
        %vm919 = vmor %vm917, %vm918
        %v920 = vsel %vm919, %v911, %v916
        %v921 = vrsqrt.pop %v781
        %v922 = vmul.f32 %v921, %v781
        %v923 = vmul.f32 %v922, %v921
        %v924 = vmul.f32 0.5, %v923
        %v925 = vsub.f32 1.5, %v924
        %v926 = vmul.f32 %v921, %v925
        %vm927 = vweird.f32 %v781
        %vm928 = vweird.f32 %v921
        %vm929 = vmor %vm927, %vm928
        %v930 = vsel %vm929, %v921, %v926
        %v931 = vrsqrt.pop %v782
        %v932 = vmul.f32 %v931, %v782
        %v933 = vmul.f32 %v932, %v931
        %v934 = vmul.f32 0.5, %v933
        %v935 = vsub.f32 1.5, %v934
        %v936 = vmul.f32 %v931, %v935
        %vm937 = vweird.f32 %v782
        %vm938 = vweird.f32 %v931
        %vm939 = vmor %vm937, %vm938
        %v940 = vsel %vm939, %v931, %v936
        %v941 = vrsqrt.pop %v783
        %v942 = vmul.f32 %v941, %v783
        %v943 = vmul.f32 %v942, %v941
        %v944 = vmul.f32 0.5, %v943
        %v945 = vsub.f32 1.5, %v944
        %v946 = vmul.f32 %v941, %v945
        %vm947 = vweird.f32 %v783
        %vm948 = vweird.f32 %v941
        %vm949 = vmor %vm947, %vm948
        %v950 = vsel %vm949, %v941, %v946
        %v951 = vrsqrt.pop %v784
        %v952 = vmul.f32 %v951, %v784
        %v953 = vmul.f32 %v952, %v951
        %v954 = vmul.f32 0.5, %v953
        %v955 = vsub.f32 1.5, %v954
        %v956 = vmul.f32 %v951, %v955
        %vm957 = vweird.f32 %v784
        %vm958 = vweird.f32 %v951
        %vm959 = vmor %vm957, %vm958
        %v960 = vsel %vm959, %v951, %v956
        %v961 = vrsqrt.pop %v785
        %v962 = vmul.f32 %v961, %v785
        %v963 = vmul.f32 %v962, %v961
        %v964 = vmul.f32 0.5, %v963
        %v965 = vsub.f32 1.5, %v964
        %v966 = vmul.f32 %v961, %v965
        %vm967 = vweird.f32 %v785
        %vm968 = vweird.f32 %v961
        %vm969 = vmor %vm967, %vm968
        %v970 = vsel %vm969, %v961, %v966
        %v971 = vrsqrt.pop %v786
        %v972 = vmul.f32 %v971, %v786
        %v973 = vmul.f32 %v972, %v971
        %v974 = vmul.f32 0.5, %v973
        %v975 = vsub.f32 1.5, %v974
        %v976 = vmul.f32 %v971, %v975
        %vm977 = vweird.f32 %v786
        %vm978 = vweird.f32 %v971
        %vm979 = vmor %vm977, %vm978
        %v980 = vsel %vm979, %v971, %v976
        %v981 = vrsqrt.pop %v787
        %v982 = vmul.f32 %v981, %v787
        %v983 = vmul.f32 %v982, %v981
        %v984 = vmul.f32 0.5, %v983
        %v985 = vsub.f32 1.5, %v984
        %v986 = vmul.f32 %v981, %v985
        %vm987 = vweird.f32 %v787
        %vm988 = vweird.f32 %v981
        %vm989 = vmor %vm987, %vm988
        %v990 = vsel %vm989, %v981, %v986
        %v991 = vrsqrt.pop %v788
        %v992 = vmul.f32 %v991, %v788
        %v993 = vmul.f32 %v992, %v991
        %v994 = vmul.f32 0.5, %v993
        %v995 = vsub.f32 1.5, %v994
        %v996 = vmul.f32 %v991, %v995
        %vm997 = vweird.f32 %v788
        %vm998 = vweird.f32 %v991
        %vm999 = vmor %vm997, %vm998
        %v1000 = vsel %vm999, %v991, %v996
        %v1001 = vrsqrt.pop %v789
        %v1002 = vmul.f32 %v1001, %v789
        %v1003 = vmul.f32 %v1002, %v1001
        %v1004 = vmul.f32 0.5, %v1003
        %v1005 = vsub.f32 1.5, %v1004
        %v1006 = vmul.f32 %v1001, %v1005
        %vm1007 = vweird.f32 %v789
        %vm1008 = vweird.f32 %v1001
        %vm1009 = vmor %vm1007, %vm1008
        %v1010 = vsel %vm1009, %v1001, %v1006
        %v1011 = vrsqrt.pop %v790
        %v1012 = vmul.f32 %v1011, %v790
        %v1013 = vmul.f32 %v1012, %v1011
        %v1014 = vmul.f32 0.5, %v1013
        %v1015 = vsub.f32 1.5, %v1014
        %v1016 = vmul.f32 %v1011, %v1015
        %vm1017 = vweird.f32 %v790
        %vm1018 = vweird.f32 %v1011
        %vm1019 = vmor %vm1017, %vm1018
        %v1020 = vsel %vm1019, %v1011, %v1016
        %v1021 = vrsqrt.pop %v791
        %v1022 = vmul.f32 %v1021, %v791
        %v1023 = vmul.f32 %v1022, %v1021
        %v1024 = vmul.f32 0.5, %v1023
        %v1025 = vsub.f32 1.5, %v1024
        %v1026 = vmul.f32 %v1021, %v1025
        %vm1027 = vweird.f32 %v791
        %vm1028 = vweird.f32 %v1021
        %vm1029 = vmor %vm1027, %vm1028
        %v1030 = vsel %vm1029, %v1021, %v1026
        %v1031 = vrsqrt.pop %v792
        %v1032 = vmul.f32 %v1031, %v792
        %v1033 = vmul.f32 %v1032, %v1031
        %v1034 = vmul.f32 0.5, %v1033
        %v1035 = vsub.f32 1.5, %v1034
        %v1036 = vmul.f32 %v1031, %v1035
        %vm1037 = vweird.f32 %v792
        %vm1038 = vweird.f32 %v1031
        %vm1039 = vmor %vm1037, %vm1038
        %v1040 = vsel %vm1039, %v1031, %v1036
        %v1041 = vrsqrt.pop %v793
        %v1042 = vmul.f32 %v1041, %v793
        %v1043 = vmul.f32 %v1042, %v1041
        %v1044 = vmul.f32 0.5, %v1043
        %v1045 = vsub.f32 1.5, %v1044
        %v1046 = vmul.f32 %v1041, %v1045
        %vm1047 = vweird.f32 %v793
        %vm1048 = vweird.f32 %v1041
        %vm1049 = vmor %vm1047, %vm1048
        %v1050 = vsel %vm1049, %v1041, %v1046
        %v1051 = vrsqrt.pop %v794
        %v1052 = vmul.f32 %v1051, %v794
        %v1053 = vmul.f32 %v1052, %v1051
        %v1054 = vmul.f32 0.5, %v1053
        %v1055 = vsub.f32 1.5, %v1054
        %v1056 = vmul.f32 %v1051, %v1055
        %vm1057 = vweird.f32 %v794
        %vm1058 = vweird.f32 %v1051
        %vm1059 = vmor %vm1057, %vm1058
        %v1060 = vsel %vm1059, %v1051, %v1056
        %v1061 = vrsqrt.pop %v795
        %v1062 = vmul.f32 %v1061, %v795
        %v1063 = vmul.f32 %v1062, %v1061
        %v1064 = vmul.f32 0.5, %v1063
        %v1065 = vsub.f32 1.5, %v1064
        %v1066 = vmul.f32 %v1061, %v1065
        %vm1067 = vweird.f32 %v795
        %vm1068 = vweird.f32 %v1061
        %vm1069 = vmor %vm1067, %vm1068
        %v1070 = vsel %vm1069, %v1061, %v1066
        %v1071 = vrsqrt.pop %v796
        %v1072 = vmul.f32 %v1071, %v796
        %v1073 = vmul.f32 %v1072, %v1071
        %v1074 = vmul.f32 0.5, %v1073
        %v1075 = vsub.f32 1.5, %v1074
        %v1076 = vmul.f32 %v1071, %v1075
        %vm1077 = vweird.f32 %v796
        %vm1078 = vweird.f32 %v1071
        %vm1079 = vmor %vm1077, %vm1078
        %v1080 = vsel %vm1079, %v1071, %v1076
        %v1081 = vrsqrt.pop %v797
        %v1082 = vmul.f32 %v1081, %v797
        %v1083 = vmul.f32 %v1082, %v1081
        %v1084 = vmul.f32 0.5, %v1083
        %v1085 = vsub.f32 1.5, %v1084
        %v1086 = vmul.f32 %v1081, %v1085
        %vm1087 = vweird.f32 %v797
        %vm1088 = vweird.f32 %v1081
        %vm1089 = vmor %vm1087, %vm1088
        %v1090 = vsel %vm1089, %v1081, %v1086
        %v1091 = vrsqrt.pop %v798
        %v1092 = vmul.f32 %v1091, %v798
        %v1093 = vmul.f32 %v1092, %v1091
        %v1094 = vmul.f32 0.5, %v1093
        %v1095 = vsub.f32 1.5, %v1094
        %v1096 = vmul.f32 %v1091, %v1095
        %vm1097 = vweird.f32 %v798
        %vm1098 = vweird.f32 %v1091
        %vm1099 = vmor %vm1097, %vm1098
        %v1100 = vsel %vm1099, %v1091, %v1096
        %v1101 = vrsqrt.pop %v799
        %v1102 = vmul.f32 %v1101, %v799
        %v1103 = vmul.f32 %v1102, %v1101
        %v1104 = vmul.f32 0.5, %v1103
        %v1105 = vsub.f32 1.5, %v1104
        %v1106 = vmul.f32 %v1101, %v1105
        %vm1107 = vweird.f32 %v799
        %vm1108 = vweird.f32 %v1101
        %vm1109 = vmor %vm1107, %vm1108
        %v1110 = vsel %vm1109, %v1101, %v1106
        %v1111 = vrsqrt.pop %v800
        %v1112 = vmul.f32 %v1111, %v800
        %v1113 = vmul.f32 %v1112, %v1111
        %v1114 = vmul.f32 0.5, %v1113
        %v1115 = vsub.f32 1.5, %v1114
        %v1116 = vmul.f32 %v1111, %v1115
        %vm1117 = vweird.f32 %v800
        %vm1118 = vweird.f32 %v1111
        %vm1119 = vmor %vm1117, %vm1118
        %v1120 = vsel %vm1119, %v1111, %v1116
        %v1121 = vmul.f32 %v641, %v810
        %v1122 = vmul.f32 %v642, %v820
        %v1123 = vmul.f32 %v643, %v830
        %v1124 = vmul.f32 %v644, %v840
        %v1125 = vmul.f32 %v645, %v850
        %v1126 = vmul.f32 %v646, %v860
        %v1127 = vmul.f32 %v647, %v870
        %v1128 = vmul.f32 %v648, %v880
        %v1129 = vmul.f32 %v649, %v890
        %v1130 = vmul.f32 %v650, %v900
        %v1131 = vmul.f32 %v651, %v910
        %v1132 = vmul.f32 %v652, %v920
        %v1133 = vmul.f32 %v653, %v930
        %v1134 = vmul.f32 %v654, %v940
        %v1135 = vmul.f32 %v655, %v950
        %v1136 = vmul.f32 %v656, %v960
        %v1137 = vmul.f32 %v657, %v970
        %v1138 = vmul.f32 %v658, %v980
        %v1139 = vmul.f32 %v659, %v990
        %v1140 = vmul.f32 %v660, %v1000
        %v1141 = vmul.f32 %v661, %v1010
        %v1142 = vmul.f32 %v662, %v1020
        %v1143 = vmul.f32 %v663, %v1030
        %v1144 = vmul.f32 %v664, %v1040
        %v1145 = vmul.f32 %v665, %v1050
        %v1146 = vmul.f32 %v666, %v1060
        %v1147 = vmul.f32 %v667, %v1070
        %v1148 = vmul.f32 %v668, %v1080
        %v1149 = vmul.f32 %v669, %v1090
        %v1150 = vmul.f32 %v670, %v1100
        %v1151 = vmul.f32 %v671, %v1110
        %v1152 = vmul.f32 %v672, %v1120
        %1153 = vst [vmem:[%s218] sm:$0xff] %v1121
        %1154 = vst [vmem:[%s218 + $0x8] sm:$0xff] %v1122
        %1155 = vst [vmem:[%s218 + $0x10] sm:$0xff] %v1123
        %1156 = vst [vmem:[%s218 + $0x18] sm:$0xff] %v1124
        %1157 = vst [vmem:[%s218 + $0x20] sm:$0xff] %v1125
        %1158 = vst [vmem:[%s218 + $0x28] sm:$0xff] %v1126
        %1159 = vst [vmem:[%s218 + $0x30] sm:$0xff] %v1127
        %1160 = vst [vmem:[%s218 + $0x38] sm:$0xff] %v1128
        %1161 = vst [vmem:[%s218 + $0x40] sm:$0xff] %v1129
        %1162 = vst [vmem:[%s218 + $0x48] sm:$0xff] %v1130
        %1163 = vst [vmem:[%s218 + $0x50] sm:$0xff] %v1131
        %1164 = vst [vmem:[%s218 + $0x58] sm:$0xff] %v1132
        %1165 = vst [vmem:[%s218 + $0x60] sm:$0xff] %v1133
        %1166 = vst [vmem:[%s218 + $0x68] sm:$0xff] %v1134
        %1167 = vst [vmem:[%s218 + $0x70] sm:$0xff] %v1135
        %1168 = vst [vmem:[%s218 + $0x78] sm:$0xff] %v1136
        %1169 = vst [vmem:[%s218 + $0x80] sm:$0xff] %v1137
        %1170 = vst [vmem:[%s218 + $0x88] sm:$0xff] %v1138
        %1171 = vst [vmem:[%s218 + $0x90] sm:$0xff] %v1139
        %1172 = vst [vmem:[%s218 + $0x98] sm:$0xff] %v1140
        %1173 = vst [vmem:[%s218 + $0xa0] sm:$0xff] %v1141
        %1174 = vst [vmem:[%s218 + $0xa8] sm:$0xff] %v1142
        %1175 = vst [vmem:[%s218 + $0xb0] sm:$0xff] %v1143
        %1176 = vst [vmem:[%s218 + $0xb8] sm:$0xff] %v1144
        %1177 = vst [vmem:[%s218 + $0xc0] sm:$0xff] %v1145
        %1178 = vst [vmem:[%s218 + $0xc8] sm:$0xff] %v1146
        %1179 = vst [vmem:[%s218 + $0xd0] sm:$0xff] %v1147
        %1180 = vst [vmem:[%s218 + $0xd8] sm:$0xff] %v1148
        %1181 = vst [vmem:[%s218 + $0xe0] sm:$0xff] %v1149
        %1182 = vst [vmem:[%s218 + $0xe8] sm:$0xff] %v1150
        %1183 = vst [vmem:[%s218 + $0xf0] sm:$0xff] %v1151
        %1184 = vst [vmem:[%s218 + $0xf8] sm:$0xff] %v1152
        %s1185 = sand.u32 %s137, 1
        %s1186 = scalar_lea.sflag [#allocation3], %s1185
        %s1187 = sand.u32 %s137, 1
        %s1188 = smul.addr %s1187, 256
        %s1189 = scalar_lea.vmem [#allocation2], %s1188
        // Predicated region
        $region41: #{tpu_custom_call.1} parent=39 // pred_check
          %p1190 = pneg %p147
        $region42: #{tpu_custom_call.1} parent=39 // pred_check_branch
          %1192 = sbr.rel (%p1190) target = $region44
        $region43: #{tpu_custom_call.1} parent=39 // pred_region
          %s1193 = smul.u32 32, %s19
          %1195 = vsyncadd %s1186, 0
          %s1196 = smul.addr %s1193, 8
          %s1197 = scalar_lea.hbm %s5, %s1196
          %s1198 = sshll.u32 %s1189, 4
          %s1199 = int_to_ptr.vmem [resolvable:$true] %s1198
          %s1200 = sshll.u32 %s1197, 4
          %s1201 = int_to_ptr.hbm [resolvable:$true] %s1200
          %1206 = dma.vmem_to_hbm [thread:$0]  %s1199, 4096, %s1201, %s1186, 128, 128, 8
        $region44: #{tpu_custom_call.1} parent=39 // pred_fallthru
          _
      $region40: #{tpu_custom_call.1} parent=5 // pred_fallthru
        _
      %p1207 = scmp.le.s32.totalorder 2, %s14
      // Predicated region
      $region45: #{tpu_custom_call.1} parent=5 // pred_check
        %p1208 = pneg %p1207
      $region46: #{tpu_custom_call.1} parent=5 // pred_check_branch
        %1210 = sbr.rel (%p1208) target = $region48
      $region47: #{tpu_custom_call.1} parent=5 // pred_region
        %s1211 = ssub.s32 %s14, 2
        // Predicated region
        $region49: #{tpu_custom_call.1} parent=47 // pred_check
          %p1212 = pneg %p153
        $region50: #{tpu_custom_call.1} parent=47 // pred_check_branch
          %1214 = sbr.rel (%p1212) target = $region52
        $region51: #{tpu_custom_call.1} parent=47 // pred_region
          %s1215 = sand.u32 %s138, 1
          %s1216 = scalar_lea.sflag [#allocation3], %s1215
          %s1217 = sand.u32 %s138, 1
          %s1218 = smul.addr %s1217, 256
          %s1219 = scalar_lea.vmem [#allocation2], %s1218
          %1221 = dma.done %s1216, 4096
        $region52: #{tpu_custom_call.1} parent=47 // pred_fallthru
          _
      $region48: #{tpu_custom_call.1} parent=5 // pred_fallthru
        _
    $region6: #{tpu_custom_call.1} parent=1 // loop_footer
      %s18 = sadd.s32 1, %s14
    $region7: #{tpu_custom_call.1} parent=1 // loop_footer_branch
      %13 = sbr.rel target = $region3
    $region8: #{tpu_custom_call.1} parent=1 // loop_exit
      _
    %1222 = vsyncpa [#allocation3], 1
    %s1223 = scalar_lea.sflag [#allocation3], 1
    %1224 = vsyncpa %s1223, 1

</llo_original>
